<compile_context>
chip_gen: v7x
topology: tpu7x:2x2x1
jax: 0.10.0
libtpu: 0.0.40
codegen_flags: <defaults>
</compile_context>

<pallas_src>
import functools

import jax
import jax.numpy as jnp
from jax.experimental import pallas as pl
from jax.experimental.pallas import tpu as pltpu


_VMEM_BUDGET = 24 * 2**20       # double-buffered working set, safe on v7x (64 MiB)
_VMEM_CAP = 32 * 2**20          # never request more than the scoped default
_FULL_BLOCK_LIMIT = 2048        # max hw for a single full-dim block when hw%128 != 0


def _round_up(x, m):
    return (x + m - 1) // m * m


def _axis_plan(hw, cap, include_full):
    """Tile candidates (descending) for one output axis.

    Returns (padded_dim, candidates, needs_crop).  Candidates are multiples of
    128 that divide the (possibly padded) dim; a single full-dim block is used
    when hw is not 128-aligned (legal: block dim == full array dim), so
    padding + a post-kernel crop only remains for very large misaligned hw.
    """
    divs = [t for t in range(128, min(cap, hw) + 1, 128) if hw % t == 0]
    if divs:
        cands = sorted(divs, reverse=True)
        if include_full and hw not in cands:
            cands = [hw] + cands          # full-N block => B resident per batch
        return hw, cands, False
    if hw <= _FULL_BLOCK_LIMIT:
        return hw, [hw], False            # single full-dim block, no padding
    hw_p = _round_up(hw, 128)
    divs = [t for t in range(128, min(cap, hw_p) + 1, 128) if hw_p % t == 0]
    return hw_p, sorted(divs, reverse=True), True


def _corr_kernel(fa_ref, fb_ref, out_ref, *, precision):
    # fa_ref:  (1, c_p, TM)   columns i <-> (ha, wa) with i = wa*h + ha
    # fb_ref:  (1, c_p, TN)   columns j <-> (hb, wb) with j = hb*w + wb
    # out_ref: (1, TM, TN)
    out_ref[0] = jax.lax.dot_general(
        fa_ref[0], fb_ref[0],
        dimension_numbers=(((0,), (0,)), ((), ())),   # contract channel dim
        preferred_element_type=jnp.float32,
        precision=precision,
    ).astype(out_ref.dtype)


@functools.partial(jax.jit, static_argnames=("compute_dtype", "out_dtype"))
def feature_correlation(feature_A, feature_B, *,
                        compute_dtype=jnp.float32, out_dtype=jnp.float32):
    """Pallas implementation of FeatureCorrelation.forward.

    feature_A, feature_B: (b, c, h, w) float32 (NCHW, like PyTorch).
    Returns: (b, h*w, h, w) in out_dtype (float32 by default, matching PyTorch).
    compute_dtype=bfloat16 / out_dtype=bfloat16 are opt-in fast paths.
    """
    b, c, h, w = feature_A.shape
    hw = h * w

    in_dtype = jnp.dtype(compute_dtype)
    out_dt = jnp.dtype(out_dtype)
    in_bytes = in_dtype.itemsize
    out_bytes = out_dt.itemsize

    # Channel padding to the sublane packing (8 for f32, 16 for bf16).
    c_mult = 8 if in_bytes == 4 else 16
    c_p = _round_up(c, c_mult)

    # ---- tile planning (crop-free unless hw is huge AND misaligned) ----
    hw_m, tm_opts, crop_m = _axis_plan(hw, cap=1024, include_full=False)
    hw_n, tn_opts, crop_n = _axis_plan(hw, cap=512, include_full=True)

    def vmem_bytes(tm, tn):
        # double-buffered A + B + out tiles
        return 2 * c_p * (tm + tn) * in_bytes + 2 * tm * tn * out_bytes

    tm_i = tn_i = 0
    tm, tn = tm_opts[tm_i], tn_opts[tn_i]
    # Shrink tn first (keeps tm large -> fewer B re-reads), then tm.
    while vmem_bytes(tm, tn) > _VMEM_BUDGET:
        if tn_i + 1 < len(tn_opts):
            tn_i += 1
            tn = tn_opts[tn_i]
        elif tm_i + 1 < len(tm_opts):
            tm_i += 1
            tm = tm_opts[tm_i]
        else:
            break

    m_tiles, n_tiles = hw_m // tm, hw_n // tn
    grid = (b, m_tiles, n_tiles)

    # ---- operand layout (lane-dense in the spatial dim) ----
    # A: (b,c,h,w) -> (b,c,w,h) -> (b,c,hw); column i = wa*h + ha (in-plane swap only).
    fA = jnp.transpose(feature_A, (0, 1, 3, 2)).reshape(b, c, hw).astype(in_dtype)
    # B: (b,c,h,w) -> (b,c,hw); column j = hb*w + wb.
    fB = feature_B.reshape(b, c, hw).astype(in_dtype)
    if c_p != c or hw_m != hw:
        fA = jnp.pad(fA, ((0, 0), (0, c_p - c), (0, hw_m - hw)))
    if c_p != c or hw_n != hw:
        fB = jnp.pad(fB, ((0, 0), (0, c_p - c), (0, hw_n - hw)))

    # Exact f32 accumulation for the default path; DEFAULT passes for bf16.
    precision = (jax.lax.Precision.HIGHEST if in_dtype == jnp.float32
                 else jax.lax.Precision.DEFAULT)

    # ---- HBM traffic / cost hints ----
    # A is fetched once per (b, mi): its index_map ignores ni (innermost axis).
    a_read = b * c_p * hw_m * in_bytes
    # B is fetched once per batch when the N axis is a single block (resident),
    # otherwise once per M-tile sweep.
    b_read = (b * c_p * hw_n * in_bytes if n_tiles == 1
              else b * m_tiles * c_p * hw_n * in_bytes)
    cost = pl.CostEstimate(
        flops=2 * b * c_p * hw_m * hw_n,
        transcendentals=0,
        bytes_accessed=a_read + b_read + b * hw_m * hw_n * out_bytes,
    )

    vmem_limit = int(min(_VMEM_CAP,
                         max(16 * 2**20, vmem_bytes(tm, tn) + 4 * 2**20)))

    out = pl.pallas_call(
        functools.partial(_corr_kernel, precision=precision),
        out_shape=jax.ShapeDtypeStruct((b, hw_m, hw_n), out_dt),
        grid=grid,
        in_specs=[
            pl.BlockSpec((1, c_p, tm), lambda bi, mi, ni: (bi, 0, mi)),
            pl.BlockSpec((1, c_p, tn), lambda bi, mi, ni: (bi, 0, ni)),
        ],
        out_specs=pl.BlockSpec((1, tm, tn), lambda bi, mi, ni: (bi, mi, ni)),
        compiler_params=pltpu.CompilerParams(
            dimension_semantics=("parallel", "parallel", "arbitrary"),
            vmem_limit_bytes=vmem_limit,
        ),
        cost_estimate=cost,
    )(fA, fB)

    if crop_m or crop_n:
        # Only reached for very large hw that is not a multiple of 128.
        # TODO(synk): fuse this crop into the downstream consumer instead.
        out = out[:, :hw, :hw]

    # (b, hw, hw) -> (b, h*w, h, w); j = hb*w + wb splits row-major (free view).
    return out.reshape(b, hw, h, w)


def feature_correlation_ref(feature_A, feature_B):
    # Pure-JAX reference matching the PyTorch module exactly.
    b, c, h, w = feature_A.shape
    # ref[b, wa, ha, hb, wb] = sum_c A[b,c,ha,wa] * B[b,c,hb,wb]
    ref = jnp.einsum("bcxy,bchw->byxhw", feature_A, feature_B)
    return ref.reshape(b, h * w, h, w)


if __name__ == "__main__":
    key = jax.random.PRNGKey(0)
    kA, kB = jax.random.split(key)

    b, c, h, w = 2, 4, 16, 16
    feature_A = jax.random.normal(kA, (b, c, h, w), dtype=jnp.float32)
    feature_B = jax.random.normal(kB, (b, c, h, w), dtype=jnp.float32)

    ref = feature_correlation_ref(feature_A, feature_B)

    # Default path: exact f32 (drop-in for the PyTorch op).
    out = jax.block_until_ready(feature_correlation(feature_A, feature_B))
    assert out.shape == (b, h * w, h, w), out.shape
    assert out.dtype == jnp.float32, out.dtype
    assert jnp.allclose(out, ref, atol=1e-4, rtol=1e-4), "f32 mismatch vs reference"

    # Opt-in fast path: bf16 inputs + bf16 output, f32 MXU accumulation.
    out_bf16 = jax.block_until_ready(
        feature_correlation(feature_A, feature_B,
                            compute_dtype=jnp.bfloat16, out_dtype=jnp.bfloat16))
    ref_bf16 = feature_correlation_ref(
        feature_A.astype(jnp.bfloat16).astype(jnp.float32),
        feature_B.astype(jnp.bfloat16).astype(jnp.float32))
    assert out_bf16.dtype == jnp.bfloat16
    assert jnp.allclose(out_bf16.astype(jnp.float32), ref_bf16,
                        atol=5e-2, rtol=5e-2), "bf16 mismatch vs reference"

    # Non-128-aligned spatial size: exercises the crop-free full-dim-block path.
    h2 = w2 = 15
    fA2 = jax.random.normal(kA, (b, c, h2, w2), dtype=jnp.float32)
    fB2 = jax.random.normal(kB, (b, c, h2, w2), dtype=jnp.float32)
    out2 = jax.block_until_ready(feature_correlation(fA2, fB2))
    ref2 = feature_correlation_ref(fA2, fB2)
    assert out2.shape == (b, h2 * w2, h2, w2), out2.shape
    assert jnp.allclose(out2, ref2, atol=1e-4, rtol=1e-4), "15x15 mismatch vs reference"

    print("KERNEL_OK")
</pallas_src>

<mosaic_0001>
module attributes {stable_mosaic.version = 11 : i64} {
  func.func @_corr_kernel(%arg0: i32, %arg1: i32, %arg2: i32, %arg3: memref<1x8x256xf32, #tpu.memory_space<vmem>>, %arg4: memref<1x8x256xf32, #tpu.memory_space<vmem>>, %arg5: memref<1x256x256xf32, #tpu.memory_space<vmem>>) attributes {dimension_semantics = [#tpu.dimension_semantics<parallel>, #tpu.dimension_semantics<parallel>, #tpu.dimension_semantics<arbitrary>], iteration_bounds = array<i64: 2, 1, 1>, scalar_prefetch = 0 : i64, scratch_operands = 0 : i64, tpu.core_type = #tpu.core_type<tc>, window_params = [{transform_indices = @transform_0, window_bounds = array<i64: 1, 8, 256>}, {transform_indices = @transform_1, window_bounds = array<i64: 1, 8, 256>}, {transform_indices = @transform_2, window_bounds = array<i64: 1, 256, 256>}]} {
    %c0 = arith.constant 0 : index
    %c0_0 = arith.constant 0 : index
    %c0_1 = arith.constant 0 : index
    %0 = vector.load %arg3[%c0, %c0_0, %c0_1] : memref<1x8x256xf32, #tpu.memory_space<vmem>>, vector<1x8x256xf32>
    %1 = vector.shape_cast %0 : vector<1x8x256xf32> to vector<8x256xf32>
    %c0_2 = arith.constant 0 : index
    %c0_3 = arith.constant 0 : index
    %c0_4 = arith.constant 0 : index
    %2 = vector.load %arg4[%c0_2, %c0_3, %c0_4] : memref<1x8x256xf32, #tpu.memory_space<vmem>>, vector<1x8x256xf32>
    %3 = vector.shape_cast %2 : vector<1x8x256xf32> to vector<8x256xf32>
    %cst = arith.constant dense<0.000000e+00> : vector<256x256xf32>
    %4 = tpu.matmul %1, %3, %cst {dimension_numbers = #tpu.dot_dimension_numbers<[0], [0], [1], [1], [0, 1, 1, 1], [], []>, precision = #tpu.contract_precision<fp32>} : vector<8x256xf32>, vector<8x256xf32>, vector<256x256xf32> -> vector<256x256xf32>
    %c0_5 = arith.constant 0 : index
    %c0_6 = arith.constant 0 : index
    %c0_7 = arith.constant 0 : index
    %5 = vector.load %arg5[%c0_5, %c0_6, %c0_7] : memref<1x256x256xf32, #tpu.memory_space<vmem>>, vector<1x256x256xf32>
    %6 = vector.shape_cast %5 : vector<1x256x256xf32> to vector<256x256xf32>
    %7 = vector.shape_cast %4 : vector<256x256xf32> to vector<1x256x256xf32>
    tpu.vector_store %arg5[%c0_5, %c0_6, %c0_7], %7 {strides = array<i32>} : memref<1x256x256xf32, #tpu.memory_space<vmem>>, vector<1x256x256xf32>,
    return
  }
  func.func @transform_0(%arg0: i32, %arg1: i32, %arg2: i32) -> (i32, i32, i32) {
    %c0_i32 = arith.constant 0 : i32
    %c0_i32_0 = arith.constant 0 : i32
    return %arg0, %c0_i32, %arg1 : i32, i32, i32
  }
  func.func @transform_1(%arg0: i32, %arg1: i32, %arg2: i32) -> (i32, i32, i32) {
    %c0_i32 = arith.constant 0 : i32
    %c0_i32_0 = arith.constant 0 : i32
    return %arg0, %c0_i32, %arg2 : i32, i32, i32
  }
  func.func @transform_2(%arg0: i32, %arg1: i32, %arg2: i32) -> (i32, i32, i32) {
    %c0_i32 = arith.constant 0 : i32
    return %arg0, %arg1, %arg2 : i32, i32, i32
  }
}

</mosaic_0001>

<llo_original>
// kernel: feature_correlation.1
$region0: #{feature_correlation.1}
  #allocation0 [shape = 'u32[]', space=smem, size = 0x4, offset = 0x4, fixed_abs, tag = 'smem constant byte address 0x4 - core index']
  #allocation1 [shape = 'u32[144,128]{1,0:T(1,128)}', space=vmem, size = 0x12000, scoped, tag = 'internal scratch']
  %s0 = inlined_call_operand.vmem [shape: f32[2,8,256], index: 0, kind: input, shape index: {}]
  %s1 = inlined_call_operand.vmem [shape: f32[2,8,256], index: 1, kind: input, shape index: {}]
  %s2 = inlined_call_operand.vmem [shape: f32[2,256,256], index: 2, kind: output, shape index: {}]
  %s3 = sld [smem:[#allocation0]]
  $region41: #{feature_correlation.1} parent=0
    _
  %s5 = ssub.s32 1, %s3
  %s6 = scalar_select 0, %s5, %s3
  loop: start=0, step=1, limit=4
  $region2: #{feature_correlation.1} parent=0 // loop_pre_header
    _
  $region3: #{feature_correlation.1} parent=0 // loop_header
    %s8 = sphi 0, %s12
    %p9 = scmp.ge.s32.totalorder %s8, 4
    %s15 = sphi 0, %s34
    %s16 = sphi 0, %s30
    %s17 = sphi 0, %s26
    %s18 = sphi 0, %s15
    %s19 = sphi 0, %s16
    %s20 = sphi 0, %s17
    %s21 = sphi 0, %s18
    %s22 = sphi 0, %s19
    %s23 = sphi 0, %s20
    %s39 = sphi 0, %s41
    %s42 = sphi 0, %s39
    %s43 = sphi 0, %s42
    %s59 = sphi 0, %s43
    %s67 = sphi 0, %s69
    %s70 = sphi 0, %s67
    %s71 = sphi 0, %s70
    %s87 = sphi 0, %s71
    %s97 = sphi 0, %s99
    %s100 = sphi 0, %s97
    %s101 = sphi 0, %s100
    %s117 = sphi 0, %s101
  $region4: #{feature_correlation.1} parent=0 // loop_header_branch
    %11 = sbr.rel (%p9) target = $region8
  $region5: #{feature_correlation.1} parent=0 // loop_body
    %s13 = ssub.s32 %s8, 1
    %s14 = ssub.s32 %s8, 2
    %s24 = sadd.s32 1, %s17
    %p25 = scmp.ge.s32.totalorder %s24, 1
    %s26 = scalar_select %p25, 0, %s24
    %s27 = sadd.s32 1, %s16
    %s28 = scalar_select %p25, %s27, %s16
    %p29 = scmp.ge.s32.totalorder %s28, 1
    %s30 = scalar_select %p29, 0, %s28
    %s31 = sadd.s32 1, %s15
    %s32 = scalar_select %p29, %s31, %s15
    %p33 = scmp.ge.s32.totalorder %s32, 2
    %s34 = scalar_select %p33, 0, %s32
    %s35 = ssub.s32 %s15, %s34
    %s36 = ssub.s32 %s16, %s30
    %s37 = sor.u32 %s35, %s36
    %p38 = scmp.eq.s32.totalorder %s37, 0
    %s40 = sadd.s32 %s39, 1
    %s41 = scalar_select %p38, %s39, %s40
    %p44 = pneg %p38
    %p45 = scmp.eq.s32.totalorder %s8, 1
    %p46 = por %p44, %p45
    %p47 = scmp.ne.s32.totalorder %s39, %s42
    %p48 = scmp.eq.s32.totalorder %s8, 0
    %p49 = por %p47, %p48
    %p50 = scmp.ne.s32.totalorder %s39, %s42
    %p51 = scmp.eq.s32.totalorder %s13, 1
    %p52 = por %p50, %p51
    %p53 = scmp.ne.s32.totalorder %s42, %s43
    %p54 = scmp.eq.s32.totalorder %s13, 0
    %p55 = por %p53, %p54
    %p56 = scmp.ne.s32.totalorder %s42, %s43
    %p57 = scmp.eq.s32.totalorder %s14, 1
    %p58 = por %p56, %p57
    %p60 = scmp.ne.s32.totalorder %s43, %s59
    %p61 = scmp.eq.s32.totalorder %s14, 0
    %p62 = por %p60, %p61
    %s63 = ssub.s32 %s15, %s34
    %s64 = ssub.s32 %s17, %s26
    %s65 = sor.u32 %s63, %s64
    %p66 = scmp.eq.s32.totalorder %s65, 0
    %s68 = sadd.s32 %s67, 1
    %s69 = scalar_select %p66, %s67, %s68
    %p72 = pneg %p66
    %p73 = scmp.eq.s32.totalorder %s8, 1
    %p74 = por %p72, %p73
    %p75 = scmp.ne.s32.totalorder %s67, %s70
    %p76 = scmp.eq.s32.totalorder %s8, 0
    %p77 = por %p75, %p76
    %p78 = scmp.ne.s32.totalorder %s67, %s70
    %p79 = scmp.eq.s32.totalorder %s13, 1
    %p80 = por %p78, %p79
    %p81 = scmp.ne.s32.totalorder %s70, %s71
    %p82 = scmp.eq.s32.totalorder %s13, 0
    %p83 = por %p81, %p82
    %p84 = scmp.ne.s32.totalorder %s70, %s71
    %p85 = scmp.eq.s32.totalorder %s14, 1
    %p86 = por %p84, %p85
    %p88 = scmp.ne.s32.totalorder %s71, %s87
    %p89 = scmp.eq.s32.totalorder %s14, 0
    %p90 = por %p88, %p89
    %s91 = ssub.s32 %s15, %s34
    %s92 = ssub.s32 %s16, %s30
    %s93 = sor.u32 %s91, %s92
    %s94 = ssub.s32 %s17, %s26
    %s95 = sor.u32 %s93, %s94
    %p96 = scmp.eq.s32.totalorder %s95, 0
    %s98 = sadd.s32 %s97, 1
    %s99 = scalar_select %p96, %s97, %s98
    %p102 = pneg %p96
    %p103 = scmp.eq.s32.totalorder %s8, 1
    %p104 = por %p102, %p103
    %p105 = scmp.ne.s32.totalorder %s97, %s100
    %p106 = scmp.eq.s32.totalorder %s8, 0
    %p107 = por %p105, %p106
    %p108 = scmp.ne.s32.totalorder %s97, %s100
    %p109 = scmp.eq.s32.totalorder %s13, 1
    %p110 = por %p108, %p109
    %p111 = scmp.ne.s32.totalorder %s100, %s101
    %p112 = scmp.eq.s32.totalorder %s13, 0
    %p113 = por %p111, %p112
    %p114 = scmp.ne.s32.totalorder %s100, %s101
    %p115 = scmp.eq.s32.totalorder %s14, 1
    %p116 = por %p114, %p115
    %p118 = scmp.ne.s32.totalorder %s101, %s117
    %p119 = scmp.eq.s32.totalorder %s14, 0
    %p120 = por %p118, %p119
    %p121 = scmp.le.s32.totalorder 1, %s8
    %p122 = scmp.lt.s32.totalorder %s8, 3
    %p123 = pnand %p121, %p122
    %p124 = pneg %p123
    // Predicated region
    $region9: #{feature_correlation.1} parent=5 // pred_check
      _
    $region10: #{feature_correlation.1} parent=5 // pred_check_branch
      %126 = sbr.rel (%p123) target = $region12
    $region11: #{feature_correlation.1} parent=5 // pred_region
      %s127 = ssub.s32 %s8, 1
    $region12: #{feature_correlation.1} parent=5 // pred_fallthru
      _
    %p128 = scmp.lt.s32.totalorder %s8, 2
    // Predicated region
    $region13: #{feature_correlation.1} parent=5 // pred_check
      %p129 = pneg %p128
    $region14: #{feature_correlation.1} parent=5 // pred_check_branch
      %131 = sbr.rel (%p129) target = $region16
    $region15: #{feature_correlation.1} parent=5 // pred_region
      // Predicated region
      $region17: #{feature_correlation.1} parent=15 // pred_check
        %p132 = pneg %p49
      $region18: #{feature_correlation.1} parent=15 // pred_check_branch
        %134 = sbr.rel (%p132) target = $region20
      $region19: #{feature_correlation.1} parent=15 // pred_region
        %s135 = smul.u32 2, %s16
        %p136 = scmp.lt.s32.totalorder %s15, 1
        %s137 = scalar_select %p136, %s15, 1
        %p138 = scmp.lt.s32.totalorder %s135, 1
        %s139 = scalar_select %p138, %s135, 1
        %s140 = smul.addr %s137, 2
        %s141 = sadd.s32 %s139, %s140
        %s142 = smul.addr %s141, 8
        %s143 = scalar_lea.vmem %s0, %s142
        %s144 = smul.u32 2, %s16
      $region20: #{feature_correlation.1} parent=15 // pred_fallthru
        _
      // Predicated region
      $region21: #{feature_correlation.1} parent=15 // pred_check
        %p145 = pneg %p77
      $region22: #{feature_correlation.1} parent=15 // pred_check_branch
        %147 = sbr.rel (%p145) target = $region24
      $region23: #{feature_correlation.1} parent=15 // pred_region
        %s148 = smul.u32 2, %s17
        %p149 = scmp.lt.s32.totalorder %s15, 1
        %s150 = scalar_select %p149, %s15, 1
        %p151 = scmp.lt.s32.totalorder %s148, 1
        %s152 = scalar_select %p151, %s148, 1
        %s153 = smul.addr %s150, 2
        %s154 = sadd.s32 %s152, %s153
        %s155 = smul.addr %s154, 8
        %s156 = scalar_lea.vmem %s1, %s155
        %s157 = smul.u32 2, %s17
      $region24: #{feature_correlation.1} parent=15 // pred_fallthru
        _
    $region16: #{feature_correlation.1} parent=5 // pred_fallthru
      _
    %p158 = scmp.le.s32.totalorder 1, %s8
    %p159 = scmp.lt.s32.totalorder %s8, 3
    %p160 = pnand %p158, %p159
    %p161 = pneg %p160
    // Predicated region
    $region25: #{feature_correlation.1} parent=5 // pred_check
      _
    $region26: #{feature_correlation.1} parent=5 // pred_check_branch
      %163 = sbr.rel (%p160) target = $region28
    $region27: #{feature_correlation.1} parent=5 // pred_region
      %s164 = ssub.s32 %s8, 1
      %s165 = smul.u32 2, %s19
      %p166 = scmp.lt.s32.totalorder %s18, 1
      %s167 = scalar_select %p166, %s18, 1
      %p168 = scmp.lt.s32.totalorder %s165, 1
      %s169 = scalar_select %p168, %s165, 1
      %s170 = smul.addr %s167, 2
      %s171 = sadd.s32 %s169, %s170
      %s172 = smul.addr %s171, 8
      %s173 = scalar_lea.vmem %s0, %s172
      %p174 = pneg %p55
      %p175 = pneg %p52
      %s176 = smul.u32 2, %s20
      %p177 = scmp.lt.s32.totalorder %s18, 1
      %s178 = scalar_select %p177, %s18, 1
      %p179 = scmp.lt.s32.totalorder %s176, 1
      %s180 = scalar_select %p179, %s176, 1
      %s181 = smul.addr %s178, 2
      %s182 = sadd.s32 %s180, %s181
      %s183 = smul.addr %s182, 8
      %s184 = scalar_lea.vmem %s1, %s183
      %p185 = pneg %p83
      %p186 = pneg %p80
      %p187 = pneg %p113
      %p188 = pneg %p110
      %s189 = smul.u32 32, %s19
      %s190 = smul.u32 2, %s20
      %p191 = scmp.lt.s32.totalorder %s18, 1
      %s192 = scalar_select %p191, %s18, 1
      %p193 = scmp.lt.s32.totalorder %s189, 31
      %s194 = scalar_select %p193, %s189, 31
      %p195 = scmp.lt.s32.totalorder %s190, 1
      %s196 = scalar_select %p195, %s190, 1
      %s197 = smul.addr %s194, 2
      %s198 = sadd.s32 %s196, %s197
      %s199 = smul.addr %s192, 64
      %s200 = sadd.s32 %s198, %s199
      %s201 = smul.addr %s200, 8
      %s202 = scalar_lea.vmem %s2, %s201
      %s203 = smul.u32 2, %s19
      %p204 = scmp.lt.s32.totalorder %s18, 1
      %s205 = scalar_select %p204, %s18, 1
      %p206 = scmp.lt.s32.totalorder %s203, 1
      %s207 = scalar_select %p206, %s203, 1
      %s208 = smul.addr %s205, 2
      %s209 = sadd.s32 %s207, %s208
      %s210 = smul.addr %s209, 8
      %s211 = scalar_lea.vmem %s0, %s210
      %s212 = smul.u32 2, %s19
      %s213 = smul.u32 2, %s20
      %p214 = scmp.lt.s32.totalorder %s18, 1
      %s215 = scalar_select %p214, %s18, 1
      %p216 = scmp.lt.s32.totalorder %s213, 1
      %s217 = scalar_select %p216, %s213, 1
      %s218 = smul.addr %s215, 2
      %s219 = sadd.s32 %s217, %s218
      %s220 = smul.addr %s219, 8
      %s221 = scalar_lea.vmem %s1, %s220
      %s222 = smul.u32 2, %s20
      %s223 = smul.u32 32, %s19
      %s224 = smul.u32 2, %s20
      %p225 = scmp.lt.s32.totalorder %s18, 1
      %s226 = scalar_select %p225, %s18, 1
      %p227 = scmp.lt.s32.totalorder %s223, 31
      %s228 = scalar_select %p227, %s223, 31
      %p229 = scmp.lt.s32.totalorder %s224, 1
      %s230 = scalar_select %p229, %s224, 1
      %s231 = smul.addr %s228, 2
      %s232 = sadd.s32 %s230, %s231
      %s233 = smul.addr %s226, 64
      %s234 = sadd.s32 %s232, %s233
      %s235 = smul.addr %s234, 8
      %s236 = scalar_lea.vmem %s2, %s235
      %s237 = smul.u32 32, %s19
      %s238 = smul.u32 2, %s20
      %v239 = vld [vmem:[%s211] sm:$0xff]
      %v240 = vld [vmem:[%s211 + $0x8] sm:$0xff]
      %v241 = vld [vmem:[%s221] sm:$0xff]
      %v242 = vld [vmem:[%s221 + $0x8] sm:$0xff]
      %243 = vxpose.xlu0.b32.start [1/16] %v239, 128
      %244 = vxpose.xlu0.b32.cont [2/16] 0.0, 128
      %245 = vxpose.xlu0.b32.cont [3/16] 0.0, 128
      %246 = vxpose.xlu0.b32.cont [4/16] 0.0, 128
      %247 = vxpose.xlu0.b32.cont [5/16] 0.0, 128
      %248 = vxpose.xlu0.b32.cont [6/16] 0.0, 128
      %249 = vxpose.xlu0.b32.cont [7/16] 0.0, 128
      %250 = vxpose.xlu0.b32.cont [8/16] 0.0, 128
      %251 = vxpose.xlu0.b32.cont [9/16] 0.0, 128
      %252 = vxpose.xlu0.b32.cont [10/16] 0.0, 128
      %253 = vxpose.xlu0.b32.cont [11/16] 0.0, 128
      %254 = vxpose.xlu0.b32.cont [12/16] 0.0, 128
      %255 = vxpose.xlu0.b32.cont [13/16] 0.0, 128
      %256 = vxpose.xlu0.b32.cont [14/16] 0.0, 128
      %257 = vxpose.xlu0.b32.cont [15/16] 0.0, 128
      %258 = vxpose.xlu0.b32.end [16/16] 0.0, 128
      %v259 = vpop.trf.xlu0
      %v260 = vpop.trf.xlu0
      %v261 = vpop.trf.xlu0
      %v262 = vpop.trf.xlu0
      %v263 = vpop.trf.xlu0
      %v264 = vpop.trf.xlu0
      %v265 = vpop.trf.xlu0
      %v266 = vpop.trf.xlu0
      %v267 = vpop.trf.xlu0
      %v268 = vpop.trf.xlu0
      %v269 = vpop.trf.xlu0
      %v270 = vpop.trf.xlu0
      %v271 = vpop.trf.xlu0
      %v272 = vpop.trf.xlu0
      %v273 = vpop.trf.xlu0
      %v274 = vpop.trf.xlu0
      %275 = vxpose.xlu0.b32.start [1/16] %v240, 128
      %276 = vxpose.xlu0.b32.cont [2/16] 0.0, 128
      %277 = vxpose.xlu0.b32.cont [3/16] 0.0, 128
      %278 = vxpose.xlu0.b32.cont [4/16] 0.0, 128
      %279 = vxpose.xlu0.b32.cont [5/16] 0.0, 128
      %280 = vxpose.xlu0.b32.cont [6/16] 0.0, 128
      %281 = vxpose.xlu0.b32.cont [7/16] 0.0, 128
      %282 = vxpose.xlu0.b32.cont [8/16] 0.0, 128
      %283 = vxpose.xlu0.b32.cont [9/16] 0.0, 128
      %284 = vxpose.xlu0.b32.cont [10/16] 0.0, 128
      %285 = vxpose.xlu0.b32.cont [11/16] 0.0, 128
      %286 = vxpose.xlu0.b32.cont [12/16] 0.0, 128
      %287 = vxpose.xlu0.b32.cont [13/16] 0.0, 128
      %288 = vxpose.xlu0.b32.cont [14/16] 0.0, 128
      %289 = vxpose.xlu0.b32.cont [15/16] 0.0, 128
      %290 = vxpose.xlu0.b32.end [16/16] 0.0, 128
      %v291 = vpop.trf.xlu0
      %v292 = vpop.trf.xlu0
      %v293 = vpop.trf.xlu0
      %v294 = vpop.trf.xlu0
      %v295 = vpop.trf.xlu0
      %v296 = vpop.trf.xlu0
      %v297 = vpop.trf.xlu0
      %v298 = vpop.trf.xlu0
      %v299 = vpop.trf.xlu0
      %v300 = vpop.trf.xlu0
      %v301 = vpop.trf.xlu0
      %v302 = vpop.trf.xlu0
      %v303 = vpop.trf.xlu0
      %v304 = vpop.trf.xlu0
      %v305 = vpop.trf.xlu0
      %v306 = vpop.trf.xlu0
      %vm307 = vcmask 64512
      %v309 = vsel %vm307, %v259, 0
      %v312 = vsel %vm307, %v260, 0
      %v315 = vsel %vm307, %v261, 0
      %v318 = vsel %vm307, %v262, 0
      %v321 = vsel %vm307, %v263, 0
      %v324 = vsel %vm307, %v264, 0
      %v327 = vsel %vm307, %v265, 0
      %v330 = vsel %vm307, %v266, 0
      %v333 = vsel %vm307, %v267, 0
      %v336 = vsel %vm307, %v268, 0
      %v339 = vsel %vm307, %v269, 0
      %v342 = vsel %vm307, %v270, 0
      %v345 = vsel %vm307, %v271, 0
      %v348 = vsel %vm307, %v272, 0
      %v351 = vsel %vm307, %v273, 0
      %v354 = vsel %vm307, %v274, 0
      %v357 = vsel %vm307, %v291, 0
      %v360 = vsel %vm307, %v292, 0
      %v363 = vsel %vm307, %v293, 0
      %v366 = vsel %vm307, %v294, 0
      %v369 = vsel %vm307, %v295, 0
      %v372 = vsel %vm307, %v296, 0
      %v375 = vsel %vm307, %v297, 0
      %v378 = vsel %vm307, %v298, 0
      %v381 = vsel %vm307, %v299, 0
      %v384 = vsel %vm307, %v300, 0
      %v387 = vsel %vm307, %v301, 0
      %v390 = vsel %vm307, %v302, 0
      %v393 = vsel %vm307, %v303, 0
      %v396 = vsel %vm307, %v304, 0
      %v399 = vsel %vm307, %v305, 0
      %v402 = vsel %vm307, %v306, 0
      %v404 = vand.u32 %v242, 4294901760
      %405 = vmatprep.subr.mxu0 %v404
      %v406 = vand.u32 %v241, 4294901760
      %407 = vmatpush1.msra.mxu0 %v406
      %408 = vmatprep.subr.mxu0 0.0
      %409 = vmatpush1.msra.mxu0 0.0
      %410 = vmatprep.subr.mxu0 0.0
      %411 = vmatpush1.msra.mxu0 0.0
      %412 = vmatprep.subr.mxu0 0.0
      %413 = vmatpush1.msra.mxu0 0.0
      %414 = vmatprep.subr.mxu0 0.0
      %415 = vmatpush1.msra.mxu0 0.0
      %416 = vmatprep.subr.mxu0 0.0
      %417 = vmatpush1.msra.mxu0 0.0
      %418 = vmatprep.subr.mxu0 0.0
      %419 = vmatpush1.msra.mxu0 0.0
      %420 = vmatprep.subr.mxu0 0.0
      %421 = vmatpush1.msra.mxu0 0.0
      %422 = vmatprep.subr.mxu0 0.0
      %423 = vmatpush1.msra.mxu0 0.0
      %424 = vmatprep.subr.mxu0 0.0
      %425 = vmatpush1.msra.mxu0 0.0
      %426 = vmatprep.subr.mxu0 0.0
      %427 = vmatpush1.msra.mxu0 0.0
      %428 = vmatprep.subr.mxu0 0.0
      %429 = vmatpush1.msra.mxu0 0.0
      %430 = vmatprep.subr.mxu0 0.0
      %431 = vmatpush1.msra.mxu0 0.0
      %432 = vmatprep.subr.mxu0 0.0
      %433 = vmatpush1.msra.mxu0 0.0
      %434 = vmatprep.subr.mxu0 0.0
      %435 = vmatpush1.msra.mxu0 0.0
      %436 = vmatprep.subr.mxu0 0.0
      %437 = vmatpush1.msra.mxu0 0.0
      %438 = vmatprep.subr.mxu0 0.0
      %439 = vmatpush1.msra.mxu0 0.0
      %440 = vmatprep.subr.mxu0 0.0
      %441 = vmatpush1.msra.mxu0 0.0
      %442 = vmatprep.subr.mxu0 0.0
      %443 = vmatpush1.msra.mxu0 0.0
      %444 = vmatprep.subr.mxu0 0.0
      %445 = vmatpush1.msra.mxu0 0.0
      %446 = vmatprep.subr.mxu0 0.0
      %447 = vmatpush1.msra.mxu0 0.0
      %448 = vmatprep.subr.mxu0 0.0
      %449 = vmatpush1.msra.mxu0 0.0
      %450 = vmatprep.subr.mxu0 0.0
      %451 = vmatpush1.msra.mxu0 0.0
      %452 = vmatprep.subr.mxu0 0.0
      %453 = vmatpush1.msra.mxu0 0.0
      %454 = vmatprep.subr.mxu0 0.0
      %455 = vmatpush1.msra.mxu0 0.0
      %456 = vmatprep.subr.mxu0 0.0
      %457 = vmatpush1.msra.mxu0 0.0
      %458 = vmatprep.subr.mxu0 0.0
      %459 = vmatpush1.msra.mxu0 0.0
      %460 = vmatprep.subr.mxu0 0.0
      %461 = vmatpush1.msra.mxu0 0.0
      %462 = vmatprep.subr.mxu0 0.0
      %463 = vmatpush1.msra.mxu0 0.0
      %464 = vmatprep.subr.mxu0 0.0
      %465 = vmatpush1.msra.mxu0 0.0
      %466 = vmatprep.subr.mxu0 0.0
      %467 = vmatpush1.msra.mxu0 0.0
      %468 = vmatprep.subr.mxu0 0.0
      %469 = vmatpush1.msra.mxu0 0.0
      %470 = vmatprep.mubr.f32.mxu0 0.0
      %v471 = vand.u32 %v309, 4294901760
      %v472 = vsub.f32 %v309, %v471
      %v473 = vand.u32 %v472, 4294901760
      %v474 = vsub.f32 %v472, %v473
      %v475 = vand.u32 %v474, 4294901760
      %476 = vmatmul.mubr.f32.gmra.mrb[0].mxu0 %v475
      %v477 = vpop.f32.mrb[0].mxu0
      %v478 = vadd.f32 0.0, %v477
      %v479 = vpop.f32.mrb[0].mxu0
      %v480 = vadd.f32 0.0, %v479
      %481 = vmatprep.mubr.f32.mxu0 0.0
      %v482 = vand.u32 %v312, 4294901760
      %v483 = vsub.f32 %v312, %v482
      %v484 = vand.u32 %v483, 4294901760
      %v485 = vsub.f32 %v483, %v484
      %v486 = vand.u32 %v485, 4294901760
      %487 = vmatmul.mubr.f32.gmra.mrb[0].mxu0 %v486
      %v488 = vpop.f32.mrb[0].mxu0
      %v489 = vadd.f32 0.0, %v488
      %v490 = vpop.f32.mrb[0].mxu0
      %v491 = vadd.f32 0.0, %v490
      %492 = vmatprep.mubr.f32.mxu0 0.0
      %v493 = vand.u32 %v315, 4294901760
      %v494 = vsub.f32 %v315, %v493
      %v495 = vand.u32 %v494, 4294901760
      %v496 = vsub.f32 %v494, %v495
      %v497 = vand.u32 %v496, 4294901760
      %498 = vmatmul.mubr.f32.gmra.mrb[0].mxu0 %v497
      %v499 = vpop.f32.mrb[0].mxu0
      %v500 = vadd.f32 0.0, %v499
      %v501 = vpop.f32.mrb[0].mxu0
      %v502 = vadd.f32 0.0, %v501
      %503 = vmatprep.mubr.f32.mxu0 0.0
      %v504 = vand.u32 %v318, 4294901760
      %v505 = vsub.f32 %v318, %v504
      %v506 = vand.u32 %v505, 4294901760
      %v507 = vsub.f32 %v505, %v506
      %v508 = vand.u32 %v507, 4294901760
      %509 = vmatmul.mubr.f32.gmra.mrb[0].mxu0 %v508
      %v510 = vpop.f32.mrb[0].mxu0
      %v511 = vadd.f32 0.0, %v510
      %v512 = vpop.f32.mrb[0].mxu0
      %v513 = vadd.f32 0.0, %v512
      %514 = vmatprep.mubr.f32.mxu0 0.0
      %v515 = vand.u32 %v321, 4294901760
      %v516 = vsub.f32 %v321, %v515
      %v517 = vand.u32 %v516, 4294901760
      %v518 = vsub.f32 %v516, %v517
      %v519 = vand.u32 %v518, 4294901760
      %520 = vmatmul.mubr.f32.gmra.mrb[0].mxu0 %v519
      %v521 = vpop.f32.mrb[0].mxu0
      %v522 = vadd.f32 0.0, %v521
      %v523 = vpop.f32.mrb[0].mxu0
      %v524 = vadd.f32 0.0, %v523
      %525 = vmatprep.mubr.f32.mxu0 0.0
      %v526 = vand.u32 %v324, 4294901760
      %v527 = vsub.f32 %v324, %v526
      %v528 = vand.u32 %v527, 4294901760
      %v529 = vsub.f32 %v527, %v528
      %v530 = vand.u32 %v529, 4294901760
      %531 = vmatmul.mubr.f32.gmra.mrb[0].mxu0 %v530
      %v532 = vpop.f32.mrb[0].mxu0
      %v533 = vadd.f32 0.0, %v532
      %v534 = vpop.f32.mrb[0].mxu0
      %v535 = vadd.f32 0.0, %v534
      %536 = vmatprep.mubr.f32.mxu0 0.0
      %v537 = vand.u32 %v327, 4294901760
      %v538 = vsub.f32 %v327, %v537
      %v539 = vand.u32 %v538, 4294901760
      %v540 = vsub.f32 %v538, %v539
      %v541 = vand.u32 %v540, 4294901760
      %542 = vmatmul.mubr.f32.gmra.mrb[0].mxu0 %v541
      %v543 = vpop.f32.mrb[0].mxu0
      %v544 = vadd.f32 0.0, %v543
      %v545 = vpop.f32.mrb[0].mxu0
      %v546 = vadd.f32 0.0, %v545
      %547 = vmatprep.mubr.f32.mxu0 0.0
      %v548 = vand.u32 %v330, 4294901760
      %v549 = vsub.f32 %v330, %v548
      %v550 = vand.u32 %v549, 4294901760
      %v551 = vsub.f32 %v549, %v550
      %v552 = vand.u32 %v551, 4294901760
      %553 = vmatmul.mubr.f32.gmra.mrb[0].mxu0 %v552
      %v554 = vpop.f32.mrb[0].mxu0
      %v555 = vadd.f32 0.0, %v554
      %v556 = vpop.f32.mrb[0].mxu0
      %v557 = vadd.f32 0.0, %v556
      %558 = vmatprep.mubr.f32.mxu0 0.0
      %v559 = vand.u32 %v333, 4294901760
      %v560 = vsub.f32 %v333, %v559
      %v561 = vand.u32 %v560, 4294901760
      %v562 = vsub.f32 %v560, %v561
      %v563 = vand.u32 %v562, 4294901760
      %564 = vmatmul.mubr.f32.gmra.mrb[0].mxu0 %v563
      %v565 = vpop.f32.mrb[0].mxu0
      %v566 = vadd.f32 0.0, %v565
      %v567 = vpop.f32.mrb[0].mxu0
      %v568 = vadd.f32 0.0, %v567
      %569 = vmatprep.mubr.f32.mxu0 0.0
      %v570 = vand.u32 %v336, 4294901760
      %v571 = vsub.f32 %v336, %v570
      %v572 = vand.u32 %v571, 4294901760
      %v573 = vsub.f32 %v571, %v572
      %v574 = vand.u32 %v573, 4294901760
      %575 = vmatmul.mubr.f32.gmra.mrb[0].mxu0 %v574
      %v576 = vpop.f32.mrb[0].mxu0
      %v577 = vadd.f32 0.0, %v576
      %v578 = vpop.f32.mrb[0].mxu0
      %v579 = vadd.f32 0.0, %v578
      %580 = vmatprep.mubr.f32.mxu0 0.0
      %v581 = vand.u32 %v339, 4294901760
      %v582 = vsub.f32 %v339, %v581
      %v583 = vand.u32 %v582, 4294901760
      %v584 = vsub.f32 %v582, %v583
      %v585 = vand.u32 %v584, 4294901760
      %586 = vmatmul.mubr.f32.gmra.mrb[0].mxu0 %v585
      %v587 = vpop.f32.mrb[0].mxu0
      %v588 = vadd.f32 0.0, %v587
      %v589 = vpop.f32.mrb[0].mxu0
      %v590 = vadd.f32 0.0, %v589
      %591 = vmatprep.mubr.f32.mxu0 0.0
      %v592 = vand.u32 %v342, 4294901760
      %v593 = vsub.f32 %v342, %v592
      %v594 = vand.u32 %v593, 4294901760
      %v595 = vsub.f32 %v593, %v594
      %v596 = vand.u32 %v595, 4294901760
      %597 = vmatmul.mubr.f32.gmra.mrb[0].mxu0 %v596
      %v598 = vpop.f32.mrb[0].mxu0
      %v599 = vadd.f32 0.0, %v598
      %v600 = vpop.f32.mrb[0].mxu0
      %v601 = vadd.f32 0.0, %v600
      %602 = vmatprep.mubr.f32.mxu0 0.0
      %v603 = vand.u32 %v345, 4294901760
      %v604 = vsub.f32 %v345, %v603
      %v605 = vand.u32 %v604, 4294901760
      %v606 = vsub.f32 %v604, %v605
      %v607 = vand.u32 %v606, 4294901760
      %608 = vmatmul.mubr.f32.gmra.mrb[0].mxu0 %v607
      %v609 = vpop.f32.mrb[0].mxu0
      %v610 = vadd.f32 0.0, %v609
      %v611 = vpop.f32.mrb[0].mxu0
      %v612 = vadd.f32 0.0, %v611
      %613 = vmatprep.mubr.f32.mxu0 0.0
      %v614 = vand.u32 %v348, 4294901760
      %v615 = vsub.f32 %v348, %v614
      %v616 = vand.u32 %v615, 4294901760
      %v617 = vsub.f32 %v615, %v616
      %v618 = vand.u32 %v617, 4294901760
      %619 = vmatmul.mubr.f32.gmra.mrb[0].mxu0 %v618
      %v620 = vpop.f32.mrb[0].mxu0
      %v621 = vadd.f32 0.0, %v620
      %v622 = vpop.f32.mrb[0].mxu0
      %v623 = vadd.f32 0.0, %v622
      %624 = vmatprep.mubr.f32.mxu0 0.0
      %v625 = vand.u32 %v351, 4294901760
      %v626 = vsub.f32 %v351, %v625
      %v627 = vand.u32 %v626, 4294901760
      %v628 = vsub.f32 %v626, %v627
      %v629 = vand.u32 %v628, 4294901760
      %630 = vmatmul.mubr.f32.gmra.mrb[0].mxu0 %v629
      %v631 = vpop.f32.mrb[0].mxu0
      %v632 = vadd.f32 0.0, %v631
      %v633 = vpop.f32.mrb[0].mxu0
      %v634 = vadd.f32 0.0, %v633
      %635 = vmatprep.mubr.f32.mxu0 0.0
      %v636 = vand.u32 %v354, 4294901760
      %v637 = vsub.f32 %v354, %v636
      %v638 = vand.u32 %v637, 4294901760
      %v639 = vsub.f32 %v637, %v638
      %v640 = vand.u32 %v639, 4294901760
      %641 = vmatmul.mubr.f32.gmra.mrb[0].mxu0 %v640
      %v642 = vpop.f32.mrb[0].mxu0
      %v643 = vadd.f32 0.0, %v642
      %v644 = vpop.f32.mrb[0].mxu0
      %v645 = vadd.f32 0.0, %v644
      %646 = vmatprep.mubr.f32.mxu0 0.0
      %v647 = vand.u32 %v357, 4294901760
      %v648 = vsub.f32 %v357, %v647
      %v649 = vand.u32 %v648, 4294901760
      %v650 = vsub.f32 %v648, %v649
      %v651 = vand.u32 %v650, 4294901760
      %652 = vmatmul.mubr.f32.gmra.mrb[0].mxu0 %v651
      %v653 = vpop.f32.mrb[0].mxu0
      %v654 = vadd.f32 0.0, %v653
      %v655 = vpop.f32.mrb[0].mxu0
      %v656 = vadd.f32 0.0, %v655
      %657 = vmatprep.mubr.f32.mxu0 0.0
      %v658 = vand.u32 %v360, 4294901760
      %v659 = vsub.f32 %v360, %v658
      %v660 = vand.u32 %v659, 4294901760
      %v661 = vsub.f32 %v659, %v660
      %v662 = vand.u32 %v661, 4294901760
      %663 = vmatmul.mubr.f32.gmra.mrb[0].mxu0 %v662
      %v664 = vpop.f32.mrb[0].mxu0
      %v665 = vadd.f32 0.0, %v664
      %v666 = vpop.f32.mrb[0].mxu0
      %v667 = vadd.f32 0.0, %v666
      %668 = vmatprep.mubr.f32.mxu0 0.0
      %v669 = vand.u32 %v363, 4294901760
      %v670 = vsub.f32 %v363, %v669
      %v671 = vand.u32 %v670, 4294901760
      %v672 = vsub.f32 %v670, %v671
      %v673 = vand.u32 %v672, 4294901760
      %674 = vmatmul.mubr.f32.gmra.mrb[0].mxu0 %v673
      %v675 = vpop.f32.mrb[0].mxu0
      %v676 = vadd.f32 0.0, %v675
      %v677 = vpop.f32.mrb[0].mxu0
      %v678 = vadd.f32 0.0, %v677
      %679 = vmatprep.mubr.f32.mxu0 0.0
      %v680 = vand.u32 %v366, 4294901760
      %v681 = vsub.f32 %v366, %v680
      %v682 = vand.u32 %v681, 4294901760
      %v683 = vsub.f32 %v681, %v682
      %v684 = vand.u32 %v683, 4294901760
      %685 = vmatmul.mubr.f32.gmra.mrb[0].mxu0 %v684
      %v686 = vpop.f32.mrb[0].mxu0
      %v687 = vadd.f32 0.0, %v686
      %v688 = vpop.f32.mrb[0].mxu0
      %v689 = vadd.f32 0.0, %v688
      %690 = vmatprep.mubr.f32.mxu0 0.0
      %v691 = vand.u32 %v369, 4294901760
      %v692 = vsub.f32 %v369, %v691
      %v693 = vand.u32 %v692, 4294901760
      %v694 = vsub.f32 %v692, %v693
      %v695 = vand.u32 %v694, 4294901760
      %696 = vmatmul.mubr.f32.gmra.mrb[0].mxu0 %v695
      %v697 = vpop.f32.mrb[0].mxu0
      %v698 = vadd.f32 0.0, %v697
      %v699 = vpop.f32.mrb[0].mxu0
      %v700 = vadd.f32 0.0, %v699
      %701 = vmatprep.mubr.f32.mxu0 0.0
      %v702 = vand.u32 %v372, 4294901760
      %v703 = vsub.f32 %v372, %v702
      %v704 = vand.u32 %v703, 4294901760
      %v705 = vsub.f32 %v703, %v704
      %v706 = vand.u32 %v705, 4294901760
      %707 = vmatmul.mubr.f32.gmra.mrb[0].mxu0 %v706
      %v708 = vpop.f32.mrb[0].mxu0
      %v709 = vadd.f32 0.0, %v708
      %v710 = vpop.f32.mrb[0].mxu0
      %v711 = vadd.f32 0.0, %v710
      %712 = vmatprep.mubr.f32.mxu0 0.0
      %v713 = vand.u32 %v375, 4294901760
      %v714 = vsub.f32 %v375, %v713
      %v715 = vand.u32 %v714, 4294901760
      %v716 = vsub.f32 %v714, %v715
      %v717 = vand.u32 %v716, 4294901760
      %718 = vmatmul.mubr.f32.gmra.mrb[0].mxu0 %v717
      %v719 = vpop.f32.mrb[0].mxu0
      %v720 = vadd.f32 0.0, %v719
      %v721 = vpop.f32.mrb[0].mxu0
      %v722 = vadd.f32 0.0, %v721
      %723 = vmatprep.mubr.f32.mxu0 0.0
      %v724 = vand.u32 %v378, 4294901760
      %v725 = vsub.f32 %v378, %v724
      %v726 = vand.u32 %v725, 4294901760
      %v727 = vsub.f32 %v725, %v726
      %v728 = vand.u32 %v727, 4294901760
      %729 = vmatmul.mubr.f32.gmra.mrb[0].mxu0 %v728
      %v730 = vpop.f32.mrb[0].mxu0
      %v731 = vadd.f32 0.0, %v730
      %v732 = vpop.f32.mrb[0].mxu0
      %v733 = vadd.f32 0.0, %v732
      %734 = vmatprep.mubr.f32.mxu0 0.0
      %v735 = vand.u32 %v381, 4294901760
      %v736 = vsub.f32 %v381, %v735
      %v737 = vand.u32 %v736, 4294901760
      %v738 = vsub.f32 %v736, %v737
      %v739 = vand.u32 %v738, 4294901760
      %740 = vmatmul.mubr.f32.gmra.mrb[0].mxu0 %v739
      %v741 = vpop.f32.mrb[0].mxu0
      %v742 = vadd.f32 0.0, %v741
      %v743 = vpop.f32.mrb[0].mxu0
      %v744 = vadd.f32 0.0, %v743
      %745 = vmatprep.mubr.f32.mxu0 0.0
      %v746 = vand.u32 %v384, 4294901760
      %v747 = vsub.f32 %v384, %v746
      %v748 = vand.u32 %v747, 4294901760
      %v749 = vsub.f32 %v747, %v748
      %v750 = vand.u32 %v749, 4294901760
      %751 = vmatmul.mubr.f32.gmra.mrb[0].mxu0 %v750
      %v752 = vpop.f32.mrb[0].mxu0
      %v753 = vadd.f32 0.0, %v752
      %v754 = vpop.f32.mrb[0].mxu0
      %v755 = vadd.f32 0.0, %v754
      %756 = vmatprep.mubr.f32.mxu0 0.0
      %v757 = vand.u32 %v387, 4294901760
      %v758 = vsub.f32 %v387, %v757
      %v759 = vand.u32 %v758, 4294901760
      %v760 = vsub.f32 %v758, %v759
      %v761 = vand.u32 %v760, 4294901760
      %762 = vmatmul.mubr.f32.gmra.mrb[0].mxu0 %v761
      %v763 = vpop.f32.mrb[0].mxu0
      %v764 = vadd.f32 0.0, %v763
      %v765 = vpop.f32.mrb[0].mxu0
      %v766 = vadd.f32 0.0, %v765
      %767 = vmatprep.mubr.f32.mxu0 0.0
      %v768 = vand.u32 %v390, 4294901760
      %v769 = vsub.f32 %v390, %v768
      %v770 = vand.u32 %v769, 4294901760
      %v771 = vsub.f32 %v769, %v770
      %v772 = vand.u32 %v771, 4294901760
      %773 = vmatmul.mubr.f32.gmra.mrb[0].mxu0 %v772
      %v774 = vpop.f32.mrb[0].mxu0
      %v775 = vadd.f32 0.0, %v774
      %v776 = vpop.f32.mrb[0].mxu0
      %v777 = vadd.f32 0.0, %v776
      %778 = vmatprep.mubr.f32.mxu0 0.0
      %v779 = vand.u32 %v393, 4294901760
      %v780 = vsub.f32 %v393, %v779
      %v781 = vand.u32 %v780, 4294901760
      %v782 = vsub.f32 %v780, %v781
      %v783 = vand.u32 %v782, 4294901760
      %784 = vmatmul.mubr.f32.gmra.mrb[0].mxu0 %v783
      %v785 = vpop.f32.mrb[0].mxu0
      %v786 = vadd.f32 0.0, %v785
      %v787 = vpop.f32.mrb[0].mxu0
      %v788 = vadd.f32 0.0, %v787
      %789 = vmatprep.mubr.f32.mxu0 0.0
      %v790 = vand.u32 %v396, 4294901760
      %v791 = vsub.f32 %v396, %v790
      %v792 = vand.u32 %v791, 4294901760
      %v793 = vsub.f32 %v791, %v792
      %v794 = vand.u32 %v793, 4294901760
      %795 = vmatmul.mubr.f32.gmra.mrb[0].mxu0 %v794
      %v796 = vpop.f32.mrb[0].mxu0
      %v797 = vadd.f32 0.0, %v796
      %v798 = vpop.f32.mrb[0].mxu0
      %v799 = vadd.f32 0.0, %v798
      %800 = vmatprep.mubr.f32.mxu0 0.0
      %v801 = vand.u32 %v399, 4294901760
      %v802 = vsub.f32 %v399, %v801
      %v803 = vand.u32 %v802, 4294901760
      %v804 = vsub.f32 %v802, %v803
      %v805 = vand.u32 %v804, 4294901760
      %806 = vmatmul.mubr.f32.gmra.mrb[0].mxu0 %v805
      %v807 = vpop.f32.mrb[0].mxu0
      %v808 = vadd.f32 0.0, %v807
      %v809 = vpop.f32.mrb[0].mxu0
      %v810 = vadd.f32 0.0, %v809
      %811 = vmatprep.mubr.f32.mxu0 0.0
      %v812 = vand.u32 %v402, 4294901760
      %v813 = vsub.f32 %v402, %v812
      %v814 = vand.u32 %v813, 4294901760
      %v815 = vsub.f32 %v813, %v814
      %v816 = vand.u32 %v815, 4294901760
      %817 = vmatmul.mubr.f32.gmra.mrb[0].mxu0 %v816
      %v818 = vpop.f32.mrb[0].mxu0
      %v819 = vadd.f32 0.0, %v818
      %v820 = vpop.f32.mrb[0].mxu0
      %v821 = vadd.f32 0.0, %v820
      %822 = vdwg.mxu0
      %v823 = vand.u32 %v242, 4294901760
      %v824 = vsub.f32 %v242, %v823
      %v825 = vand.u32 %v824, 4294901760
      %v826 = vsub.f32 %v824, %v825
      %v827 = vand.u32 %v826, 4294901760
      %828 = vmatprep.subr.mxu0 %v827
      %v829 = vand.u32 %v241, 4294901760
      %v830 = vsub.f32 %v241, %v829
      %v831 = vand.u32 %v830, 4294901760
      %v832 = vsub.f32 %v830, %v831
      %v833 = vand.u32 %v832, 4294901760
      %834 = vmatpush1.msra.mxu0 %v833
      %835 = vmatprep.subr.mxu0 0.0
      %836 = vmatpush1.msra.mxu0 0.0
      %837 = vmatprep.subr.mxu0 0.0
      %838 = vmatpush1.msra.mxu0 0.0
      %839 = vmatprep.subr.mxu0 0.0
      %840 = vmatpush1.msra.mxu0 0.0
      %841 = vmatprep.subr.mxu0 0.0
      %842 = vmatpush1.msra.mxu0 0.0
      %843 = vmatprep.subr.mxu0 0.0
      %844 = vmatpush1.msra.mxu0 0.0
      %845 = vmatprep.subr.mxu0 0.0
      %846 = vmatpush1.msra.mxu0 0.0
      %847 = vmatprep.subr.mxu0 0.0
      %848 = vmatpush1.msra.mxu0 0.0
      %849 = vmatprep.subr.mxu0 0.0
      %850 = vmatpush1.msra.mxu0 0.0
      %851 = vmatprep.subr.mxu0 0.0
      %852 = vmatpush1.msra.mxu0 0.0
      %853 = vmatprep.subr.mxu0 0.0
      %854 = vmatpush1.msra.mxu0 0.0
      %855 = vmatprep.subr.mxu0 0.0
      %856 = vmatpush1.msra.mxu0 0.0
      %857 = vmatprep.subr.mxu0 0.0
      %858 = vmatpush1.msra.mxu0 0.0
      %859 = vmatprep.subr.mxu0 0.0
      %860 = vmatpush1.msra.mxu0 0.0
      %861 = vmatprep.subr.mxu0 0.0
      %862 = vmatpush1.msra.mxu0 0.0
      %863 = vmatprep.subr.mxu0 0.0
      %864 = vmatpush1.msra.mxu0 0.0
      %865 = vmatprep.subr.mxu0 0.0
      %866 = vmatpush1.msra.mxu0 0.0
      %867 = vmatprep.subr.mxu0 0.0
      %868 = vmatpush1.msra.mxu0 0.0
      %869 = vmatprep.subr.mxu0 0.0
      %870 = vmatpush1.msra.mxu0 0.0
      %871 = vmatprep.subr.mxu0 0.0
      %872 = vmatpush1.msra.mxu0 0.0
      %873 = vmatprep.subr.mxu0 0.0
      %874 = vmatpush1.msra.mxu0 0.0
      %875 = vmatprep.subr.mxu0 0.0
      %876 = vmatpush1.msra.mxu0 0.0
      %877 = vmatprep.subr.mxu0 0.0
      %878 = vmatpush1.msra.mxu0 0.0
      %879 = vmatprep.subr.mxu0 0.0
      %880 = vmatpush1.msra.mxu0 0.0
      %881 = vmatprep.subr.mxu0 0.0
      %882 = vmatpush1.msra.mxu0 0.0
      %883 = vmatprep.subr.mxu0 0.0
      %884 = vmatpush1.msra.mxu0 0.0
      %885 = vmatprep.subr.mxu0 0.0
      %886 = vmatpush1.msra.mxu0 0.0
      %887 = vmatprep.subr.mxu0 0.0
      %888 = vmatpush1.msra.mxu0 0.0
      %889 = vmatprep.subr.mxu0 0.0
      %890 = vmatpush1.msra.mxu0 0.0
      %891 = vmatprep.subr.mxu0 0.0
      %892 = vmatpush1.msra.mxu0 0.0
      %893 = vmatprep.subr.mxu0 0.0
      %894 = vmatpush1.msra.mxu0 0.0
      %895 = vmatprep.subr.mxu0 0.0
      %896 = vmatpush1.msra.mxu0 0.0
      %897 = vmatprep.mubr.f32.mxu0 0.0
      %v898 = vand.u32 %v309, 4294901760
      %899 = vmatmul.mubr.f32.gmra.mrb[0].mxu0 %v898
      %v900 = vpop.f32.mrb[0].mxu0
      %v901 = vadd.f32 %v478, %v900
      %v902 = vpop.f32.mrb[0].mxu0
      %v903 = vadd.f32 %v480, %v902
      %904 = vmatprep.mubr.f32.mxu0 0.0
      %v905 = vand.u32 %v312, 4294901760
      %906 = vmatmul.mubr.f32.gmra.mrb[0].mxu0 %v905
      %v907 = vpop.f32.mrb[0].mxu0
      %v908 = vadd.f32 %v489, %v907
      %v909 = vpop.f32.mrb[0].mxu0
      %v910 = vadd.f32 %v491, %v909
      %911 = vmatprep.mubr.f32.mxu0 0.0
      %v912 = vand.u32 %v315, 4294901760
      %913 = vmatmul.mubr.f32.gmra.mrb[0].mxu0 %v912
      %v914 = vpop.f32.mrb[0].mxu0
      %v915 = vadd.f32 %v500, %v914
      %v916 = vpop.f32.mrb[0].mxu0
      %v917 = vadd.f32 %v502, %v916
      %918 = vmatprep.mubr.f32.mxu0 0.0
      %v919 = vand.u32 %v318, 4294901760
      %920 = vmatmul.mubr.f32.gmra.mrb[0].mxu0 %v919
      %v921 = vpop.f32.mrb[0].mxu0
      %v922 = vadd.f32 %v511, %v921
      %v923 = vpop.f32.mrb[0].mxu0
      %v924 = vadd.f32 %v513, %v923
      %925 = vmatprep.mubr.f32.mxu0 0.0
      %v926 = vand.u32 %v321, 4294901760
      %927 = vmatmul.mubr.f32.gmra.mrb[0].mxu0 %v926
      %v928 = vpop.f32.mrb[0].mxu0
      %v929 = vadd.f32 %v522, %v928
      %v930 = vpop.f32.mrb[0].mxu0
      %v931 = vadd.f32 %v524, %v930
      %932 = vmatprep.mubr.f32.mxu0 0.0
      %v933 = vand.u32 %v324, 4294901760
      %934 = vmatmul.mubr.f32.gmra.mrb[0].mxu0 %v933
      %v935 = vpop.f32.mrb[0].mxu0
      %v936 = vadd.f32 %v533, %v935
      %v937 = vpop.f32.mrb[0].mxu0
      %v938 = vadd.f32 %v535, %v937
      %939 = vmatprep.mubr.f32.mxu0 0.0
      %v940 = vand.u32 %v327, 4294901760
      %941 = vmatmul.mubr.f32.gmra.mrb[0].mxu0 %v940
      %v942 = vpop.f32.mrb[0].mxu0
      %v943 = vadd.f32 %v544, %v942
      %v944 = vpop.f32.mrb[0].mxu0
      %v945 = vadd.f32 %v546, %v944
      %946 = vmatprep.mubr.f32.mxu0 0.0
      %v947 = vand.u32 %v330, 4294901760
      %948 = vmatmul.mubr.f32.gmra.mrb[0].mxu0 %v947
      %v949 = vpop.f32.mrb[0].mxu0
      %v950 = vadd.f32 %v555, %v949
      %v951 = vpop.f32.mrb[0].mxu0
      %v952 = vadd.f32 %v557, %v951
      %953 = vmatprep.mubr.f32.mxu0 0.0
      %v954 = vand.u32 %v333, 4294901760
      %955 = vmatmul.mubr.f32.gmra.mrb[0].mxu0 %v954
      %v956 = vpop.f32.mrb[0].mxu0
      %v957 = vadd.f32 %v566, %v956
      %v958 = vpop.f32.mrb[0].mxu0
      %v959 = vadd.f32 %v568, %v958
      %960 = vmatprep.mubr.f32.mxu0 0.0
      %v961 = vand.u32 %v336, 4294901760
      %962 = vmatmul.mubr.f32.gmra.mrb[0].mxu0 %v961
      %v963 = vpop.f32.mrb[0].mxu0
      %v964 = vadd.f32 %v577, %v963
      %v965 = vpop.f32.mrb[0].mxu0
      %v966 = vadd.f32 %v579, %v965
      %967 = vmatprep.mubr.f32.mxu0 0.0
      %v968 = vand.u32 %v339, 4294901760
      %969 = vmatmul.mubr.f32.gmra.mrb[0].mxu0 %v968
      %v970 = vpop.f32.mrb[0].mxu0
      %v971 = vadd.f32 %v588, %v970
      %v972 = vpop.f32.mrb[0].mxu0
      %v973 = vadd.f32 %v590, %v972
      %974 = vmatprep.mubr.f32.mxu0 0.0
      %v975 = vand.u32 %v342, 4294901760
      %976 = vmatmul.mubr.f32.gmra.mrb[0].mxu0 %v975
      %v977 = vpop.f32.mrb[0].mxu0
      %v978 = vadd.f32 %v599, %v977
      %v979 = vpop.f32.mrb[0].mxu0
      %v980 = vadd.f32 %v601, %v979
      %981 = vmatprep.mubr.f32.mxu0 0.0
      %v982 = vand.u32 %v345, 4294901760
      %983 = vmatmul.mubr.f32.gmra.mrb[0].mxu0 %v982
      %v984 = vpop.f32.mrb[0].mxu0
      %v985 = vadd.f32 %v610, %v984
      %v986 = vpop.f32.mrb[0].mxu0
      %v987 = vadd.f32 %v612, %v986
      %988 = vmatprep.mubr.f32.mxu0 0.0
      %v989 = vand.u32 %v348, 4294901760
      %990 = vmatmul.mubr.f32.gmra.mrb[0].mxu0 %v989
      %v991 = vpop.f32.mrb[0].mxu0
      %v992 = vadd.f32 %v621, %v991
      %v993 = vpop.f32.mrb[0].mxu0
      %v994 = vadd.f32 %v623, %v993
      %995 = vmatprep.mubr.f32.mxu0 0.0
      %v996 = vand.u32 %v351, 4294901760
      %997 = vmatmul.mubr.f32.gmra.mrb[0].mxu0 %v996
      %v998 = vpop.f32.mrb[0].mxu0
      %v999 = vadd.f32 %v632, %v998
      %v1000 = vpop.f32.mrb[0].mxu0
      %v1001 = vadd.f32 %v634, %v1000
      %1002 = vmatprep.mubr.f32.mxu0 0.0
      %v1003 = vand.u32 %v354, 4294901760
      %1004 = vmatmul.mubr.f32.gmra.mrb[0].mxu0 %v1003
      %v1005 = vpop.f32.mrb[0].mxu0
      %v1006 = vadd.f32 %v643, %v1005
      %v1007 = vpop.f32.mrb[0].mxu0
      %v1008 = vadd.f32 %v645, %v1007
      %1009 = vmatprep.mubr.f32.mxu0 0.0
      %v1010 = vand.u32 %v357, 4294901760
      %1011 = vmatmul.mubr.f32.gmra.mrb[0].mxu0 %v1010
      %v1012 = vpop.f32.mrb[0].mxu0
      %v1013 = vadd.f32 %v654, %v1012
      %v1014 = vpop.f32.mrb[0].mxu0
      %v1015 = vadd.f32 %v656, %v1014
      %1016 = vmatprep.mubr.f32.mxu0 0.0
      %v1017 = vand.u32 %v360, 4294901760
      %1018 = vmatmul.mubr.f32.gmra.mrb[0].mxu0 %v1017
      %v1019 = vpop.f32.mrb[0].mxu0
      %v1020 = vadd.f32 %v665, %v1019
      %v1021 = vpop.f32.mrb[0].mxu0
      %v1022 = vadd.f32 %v667, %v1021
      %1023 = vmatprep.mubr.f32.mxu0 0.0
      %v1024 = vand.u32 %v363, 4294901760
      %1025 = vmatmul.mubr.f32.gmra.mrb[0].mxu0 %v1024
      %v1026 = vpop.f32.mrb[0].mxu0
      %v1027 = vadd.f32 %v676, %v1026
      %v1028 = vpop.f32.mrb[0].mxu0
      %v1029 = vadd.f32 %v678, %v1028
      %1030 = vmatprep.mubr.f32.mxu0 0.0
      %v1031 = vand.u32 %v366, 4294901760
      %1032 = vmatmul.mubr.f32.gmra.mrb[0].mxu0 %v1031
      %v1033 = vpop.f32.mrb[0].mxu0
      %v1034 = vadd.f32 %v687, %v1033
      %v1035 = vpop.f32.mrb[0].mxu0
      %v1036 = vadd.f32 %v689, %v1035
      %1037 = vmatprep.mubr.f32.mxu0 0.0
      %v1038 = vand.u32 %v369, 4294901760
      %1039 = vmatmul.mubr.f32.gmra.mrb[0].mxu0 %v1038
      %v1040 = vpop.f32.mrb[0].mxu0
      %v1041 = vadd.f32 %v698, %v1040
      %v1042 = vpop.f32.mrb[0].mxu0
      %v1043 = vadd.f32 %v700, %v1042
      %1044 = vmatprep.mubr.f32.mxu0 0.0
      %v1045 = vand.u32 %v372, 4294901760
      %1046 = vmatmul.mubr.f32.gmra.mrb[0].mxu0 %v1045
      %v1047 = vpop.f32.mrb[0].mxu0
      %v1048 = vadd.f32 %v709, %v1047
      %v1049 = vpop.f32.mrb[0].mxu0
      %v1050 = vadd.f32 %v711, %v1049
      %1051 = vmatprep.mubr.f32.mxu0 0.0
      %v1052 = vand.u32 %v375, 4294901760
      %1053 = vmatmul.mubr.f32.gmra.mrb[0].mxu0 %v1052
      %v1054 = vpop.f32.mrb[0].mxu0
      %v1055 = vadd.f32 %v720, %v1054
      %v1056 = vpop.f32.mrb[0].mxu0
      %v1057 = vadd.f32 %v722, %v1056
      %1058 = vmatprep.mubr.f32.mxu0 0.0
      %v1059 = vand.u32 %v378, 4294901760
      %1060 = vmatmul.mubr.f32.gmra.mrb[0].mxu0 %v1059
      %v1061 = vpop.f32.mrb[0].mxu0
      %v1062 = vadd.f32 %v731, %v1061
      %v1063 = vpop.f32.mrb[0].mxu0
      %v1064 = vadd.f32 %v733, %v1063
      %1065 = vmatprep.mubr.f32.mxu0 0.0
      %v1066 = vand.u32 %v381, 4294901760
      %1067 = vmatmul.mubr.f32.gmra.mrb[0].mxu0 %v1066
      %v1068 = vpop.f32.mrb[0].mxu0
      %v1069 = vadd.f32 %v742, %v1068
      %v1070 = vpop.f32.mrb[0].mxu0
      %v1071 = vadd.f32 %v744, %v1070
      %1072 = vmatprep.mubr.f32.mxu0 0.0
      %v1073 = vand.u32 %v384, 4294901760
      %1074 = vmatmul.mubr.f32.gmra.mrb[0].mxu0 %v1073
      %v1075 = vpop.f32.mrb[0].mxu0
      %v1076 = vadd.f32 %v753, %v1075
      %v1077 = vpop.f32.mrb[0].mxu0
      %v1078 = vadd.f32 %v755, %v1077
      %1079 = vmatprep.mubr.f32.mxu0 0.0
      %v1080 = vand.u32 %v387, 4294901760
      %1081 = vmatmul.mubr.f32.gmra.mrb[0].mxu0 %v1080
      %v1082 = vpop.f32.mrb[0].mxu0
      %v1083 = vadd.f32 %v764, %v1082
      %v1084 = vpop.f32.mrb[0].mxu0
      %v1085 = vadd.f32 %v766, %v1084
      %1086 = vmatprep.mubr.f32.mxu0 0.0
      %v1087 = vand.u32 %v390, 4294901760
      %1088 = vmatmul.mubr.f32.gmra.mrb[0].mxu0 %v1087
      %v1089 = vpop.f32.mrb[0].mxu0
      %v1090 = vadd.f32 %v775, %v1089
      %v1091 = vpop.f32.mrb[0].mxu0
      %v1092 = vadd.f32 %v777, %v1091
      %1093 = vmatprep.mubr.f32.mxu0 0.0
      %v1094 = vand.u32 %v393, 4294901760
      %1095 = vmatmul.mubr.f32.gmra.mrb[0].mxu0 %v1094
      %v1096 = vpop.f32.mrb[0].mxu0
      %v1097 = vadd.f32 %v786, %v1096
      %v1098 = vpop.f32.mrb[0].mxu0
      %v1099 = vadd.f32 %v788, %v1098
      %1100 = vmatprep.mubr.f32.mxu0 0.0
      %v1101 = vand.u32 %v396, 4294901760
      %1102 = vmatmul.mubr.f32.gmra.mrb[0].mxu0 %v1101
      %v1103 = vpop.f32.mrb[0].mxu0
      %v1104 = vadd.f32 %v797, %v1103
      %v1105 = vpop.f32.mrb[0].mxu0
      %v1106 = vadd.f32 %v799, %v1105
      %1107 = vmatprep.mubr.f32.mxu0 0.0
      %v1108 = vand.u32 %v399, 4294901760
      %1109 = vmatmul.mubr.f32.gmra.mrb[0].mxu0 %v1108
      %v1110 = vpop.f32.mrb[0].mxu0
      %v1111 = vadd.f32 %v808, %v1110
      %v1112 = vpop.f32.mrb[0].mxu0
      %v1113 = vadd.f32 %v810, %v1112
      %1114 = vmatprep.mubr.f32.mxu0 0.0
      %v1115 = vand.u32 %v402, 4294901760
      %1116 = vmatmul.mubr.f32.gmra.mrb[0].mxu0 %v1115
      %v1117 = vpop.f32.mrb[0].mxu0
      %v1118 = vadd.f32 %v819, %v1117
      %v1119 = vpop.f32.mrb[0].mxu0
      %v1120 = vadd.f32 %v821, %v1119
      %1121 = vdwg.mxu0
      %v1122 = vand.u32 %v242, 4294901760
      %v1123 = vsub.f32 %v242, %v1122
      %1124 = vmatprep.subr.mxu0 %v1123
      %v1125 = vand.u32 %v241, 4294901760
      %v1126 = vsub.f32 %v241, %v1125
      %1127 = vmatpush1.msra.mxu0 %v1126
      %1128 = vmatprep.subr.mxu0 0.0
      %1129 = vmatpush1.msra.mxu0 0.0
      %1130 = vmatprep.subr.mxu0 0.0
      %1131 = vmatpush1.msra.mxu0 0.0
      %1132 = vmatprep.subr.mxu0 0.0
      %1133 = vmatpush1.msra.mxu0 0.0
      %1134 = vmatprep.subr.mxu0 0.0
      %1135 = vmatpush1.msra.mxu0 0.0
      %1136 = vmatprep.subr.mxu0 0.0
      %1137 = vmatpush1.msra.mxu0 0.0
      %1138 = vmatprep.subr.mxu0 0.0
      %1139 = vmatpush1.msra.mxu0 0.0
      %1140 = vmatprep.subr.mxu0 0.0
      %1141 = vmatpush1.msra.mxu0 0.0
      %1142 = vmatprep.subr.mxu0 0.0
      %1143 = vmatpush1.msra.mxu0 0.0
      %1144 = vmatprep.subr.mxu0 0.0
      %1145 = vmatpush1.msra.mxu0 0.0
      %1146 = vmatprep.subr.mxu0 0.0
      %1147 = vmatpush1.msra.mxu0 0.0
      %1148 = vmatprep.subr.mxu0 0.0
      %1149 = vmatpush1.msra.mxu0 0.0
      %1150 = vmatprep.subr.mxu0 0.0
      %1151 = vmatpush1.msra.mxu0 0.0
      %1152 = vmatprep.subr.mxu0 0.0
      %1153 = vmatpush1.msra.mxu0 0.0
      %1154 = vmatprep.subr.mxu0 0.0
      %1155 = vmatpush1.msra.mxu0 0.0
      %1156 = vmatprep.subr.mxu0 0.0
      %1157 = vmatpush1.msra.mxu0 0.0
      %1158 = vmatprep.subr.mxu0 0.0
      %1159 = vmatpush1.msra.mxu0 0.0
      %1160 = vmatprep.subr.mxu0 0.0
      %1161 = vmatpush1.msra.mxu0 0.0
      %1162 = vmatprep.subr.mxu0 0.0
      %1163 = vmatpush1.msra.mxu0 0.0
      %1164 = vmatprep.subr.mxu0 0.0
      %1165 = vmatpush1.msra.mxu0 0.0
      %1166 = vmatprep.subr.mxu0 0.0
      %1167 = vmatpush1.msra.mxu0 0.0
      %1168 = vmatprep.subr.mxu0 0.0
      %1169 = vmatpush1.msra.mxu0 0.0
      %1170 = vmatprep.subr.mxu0 0.0
      %1171 = vmatpush1.msra.mxu0 0.0
      %1172 = vmatprep.subr.mxu0 0.0
      %1173 = vmatpush1.msra.mxu0 0.0
      %1174 = vmatprep.subr.mxu0 0.0
      %1175 = vmatpush1.msra.mxu0 0.0
      %1176 = vmatprep.subr.mxu0 0.0
      %1177 = vmatpush1.msra.mxu0 0.0
      %1178 = vmatprep.subr.mxu0 0.0
      %1179 = vmatpush1.msra.mxu0 0.0
      %1180 = vmatprep.subr.mxu0 0.0
      %1181 = vmatpush1.msra.mxu0 0.0
      %1182 = vmatprep.subr.mxu0 0.0
      %1183 = vmatpush1.msra.mxu0 0.0
      %1184 = vmatprep.subr.mxu0 0.0
      %1185 = vmatpush1.msra.mxu0 0.0
      %1186 = vmatprep.subr.mxu0 0.0
      %1187 = vmatpush1.msra.mxu0 0.0
      %1188 = vmatprep.subr.mxu0 0.0
      %1189 = vmatpush1.msra.mxu0 0.0
      %1190 = vmatprep.mubr.f32.mxu0 0.0
      %v1191 = vand.u32 %v309, 4294901760
      %v1192 = vsub.f32 %v309, %v1191
      %1193 = vmatmul.mubr.f32.gmra.mrb[0].mxu0 %v1192
      %v1194 = vpop.f32.mrb[0].mxu0
      %v1195 = vadd.f32 %v901, %v1194
      %v1196 = vpop.f32.mrb[0].mxu0
      %v1197 = vadd.f32 %v903, %v1196
      %1198 = vmatprep.mubr.f32.mxu0 0.0
      %v1199 = vand.u32 %v312, 4294901760
      %v1200 = vsub.f32 %v312, %v1199
      %1201 = vmatmul.mubr.f32.gmra.mrb[0].mxu0 %v1200
      %v1202 = vpop.f32.mrb[0].mxu0
      %v1203 = vadd.f32 %v908, %v1202
      %v1204 = vpop.f32.mrb[0].mxu0
      %v1205 = vadd.f32 %v910, %v1204
      %1206 = vmatprep.mubr.f32.mxu0 0.0
      %v1207 = vand.u32 %v315, 4294901760
      %v1208 = vsub.f32 %v315, %v1207
      %1209 = vmatmul.mubr.f32.gmra.mrb[0].mxu0 %v1208
      %v1210 = vpop.f32.mrb[0].mxu0
      %v1211 = vadd.f32 %v915, %v1210
      %v1212 = vpop.f32.mrb[0].mxu0
      %v1213 = vadd.f32 %v917, %v1212
      %1214 = vmatprep.mubr.f32.mxu0 0.0
      %v1215 = vand.u32 %v318, 4294901760
      %v1216 = vsub.f32 %v318, %v1215
      %1217 = vmatmul.mubr.f32.gmra.mrb[0].mxu0 %v1216
      %v1218 = vpop.f32.mrb[0].mxu0
      %v1219 = vadd.f32 %v922, %v1218
      %v1220 = vpop.f32.mrb[0].mxu0
      %v1221 = vadd.f32 %v924, %v1220
      %1222 = vmatprep.mubr.f32.mxu0 0.0
      %v1223 = vand.u32 %v321, 4294901760
      %v1224 = vsub.f32 %v321, %v1223
      %1225 = vmatmul.mubr.f32.gmra.mrb[0].mxu0 %v1224
      %v1226 = vpop.f32.mrb[0].mxu0
      %v1227 = vadd.f32 %v929, %v1226
      %v1228 = vpop.f32.mrb[0].mxu0
      %v1229 = vadd.f32 %v931, %v1228
      %1230 = vmatprep.mubr.f32.mxu0 0.0
      %v1231 = vand.u32 %v324, 4294901760
      %v1232 = vsub.f32 %v324, %v1231
      %1233 = vmatmul.mubr.f32.gmra.mrb[0].mxu0 %v1232
      %v1234 = vpop.f32.mrb[0].mxu0
      %v1235 = vadd.f32 %v936, %v1234
      %v1236 = vpop.f32.mrb[0].mxu0
      %v1237 = vadd.f32 %v938, %v1236
      %1238 = vmatprep.mubr.f32.mxu0 0.0
      %v1239 = vand.u32 %v327, 4294901760
      %v1240 = vsub.f32 %v327, %v1239
      %1241 = vmatmul.mubr.f32.gmra.mrb[0].mxu0 %v1240
      %v1242 = vpop.f32.mrb[0].mxu0
      %v1243 = vadd.f32 %v943, %v1242
      %v1244 = vpop.f32.mrb[0].mxu0
      %v1245 = vadd.f32 %v945, %v1244
      %1246 = vmatprep.mubr.f32.mxu0 0.0
      %v1247 = vand.u32 %v330, 4294901760
      %v1248 = vsub.f32 %v330, %v1247
      %1249 = vmatmul.mubr.f32.gmra.mrb[0].mxu0 %v1248
      %v1250 = vpop.f32.mrb[0].mxu0
      %v1251 = vadd.f32 %v950, %v1250
      %v1252 = vpop.f32.mrb[0].mxu0
      %v1253 = vadd.f32 %v952, %v1252
      %1254 = vmatprep.mubr.f32.mxu0 0.0
      %v1255 = vand.u32 %v333, 4294901760
      %v1256 = vsub.f32 %v333, %v1255
      %1257 = vmatmul.mubr.f32.gmra.mrb[0].mxu0 %v1256
      %v1258 = vpop.f32.mrb[0].mxu0
      %v1259 = vadd.f32 %v957, %v1258
      %v1260 = vpop.f32.mrb[0].mxu0
      %v1261 = vadd.f32 %v959, %v1260
      %1262 = vmatprep.mubr.f32.mxu0 0.0
      %v1263 = vand.u32 %v336, 4294901760
      %v1264 = vsub.f32 %v336, %v1263
      %1265 = vmatmul.mubr.f32.gmra.mrb[0].mxu0 %v1264
      %v1266 = vpop.f32.mrb[0].mxu0
      %v1267 = vadd.f32 %v964, %v1266
      %v1268 = vpop.f32.mrb[0].mxu0
      %v1269 = vadd.f32 %v966, %v1268
      %1270 = vmatprep.mubr.f32.mxu0 0.0
      %v1271 = vand.u32 %v339, 4294901760
      %v1272 = vsub.f32 %v339, %v1271
      %1273 = vmatmul.mubr.f32.gmra.mrb[0].mxu0 %v1272
      %v1274 = vpop.f32.mrb[0].mxu0
      %v1275 = vadd.f32 %v971, %v1274
      %v1276 = vpop.f32.mrb[0].mxu0
      %v1277 = vadd.f32 %v973, %v1276
      %1278 = vmatprep.mubr.f32.mxu0 0.0
      %v1279 = vand.u32 %v342, 4294901760
      %v1280 = vsub.f32 %v342, %v1279
      %1281 = vmatmul.mubr.f32.gmra.mrb[0].mxu0 %v1280
      %v1282 = vpop.f32.mrb[0].mxu0
      %v1283 = vadd.f32 %v978, %v1282
      %v1284 = vpop.f32.mrb[0].mxu0
      %v1285 = vadd.f32 %v980, %v1284
      %1286 = vmatprep.mubr.f32.mxu0 0.0
      %v1287 = vand.u32 %v345, 4294901760
      %v1288 = vsub.f32 %v345, %v1287
      %1289 = vmatmul.mubr.f32.gmra.mrb[0].mxu0 %v1288
      %v1290 = vpop.f32.mrb[0].mxu0
      %v1291 = vadd.f32 %v985, %v1290
      %v1292 = vpop.f32.mrb[0].mxu0
      %v1293 = vadd.f32 %v987, %v1292
      %1294 = vmatprep.mubr.f32.mxu0 0.0
      %v1295 = vand.u32 %v348, 4294901760
      %v1296 = vsub.f32 %v348, %v1295
      %1297 = vmatmul.mubr.f32.gmra.mrb[0].mxu0 %v1296
      %v1298 = vpop.f32.mrb[0].mxu0
      %v1299 = vadd.f32 %v992, %v1298
      %v1300 = vpop.f32.mrb[0].mxu0
      %v1301 = vadd.f32 %v994, %v1300
      %1302 = vmatprep.mubr.f32.mxu0 0.0
      %v1303 = vand.u32 %v351, 4294901760
      %v1304 = vsub.f32 %v351, %v1303
      %1305 = vmatmul.mubr.f32.gmra.mrb[0].mxu0 %v1304
      %v1306 = vpop.f32.mrb[0].mxu0
      %v1307 = vadd.f32 %v999, %v1306
      %v1308 = vpop.f32.mrb[0].mxu0
      %v1309 = vadd.f32 %v1001, %v1308
      %1310 = vmatprep.mubr.f32.mxu0 0.0
      %v1311 = vand.u32 %v354, 4294901760
      %v1312 = vsub.f32 %v354, %v1311
      %1313 = vmatmul.mubr.f32.gmra.mrb[0].mxu0 %v1312
      %v1314 = vpop.f32.mrb[0].mxu0
      %v1315 = vadd.f32 %v1006, %v1314
      %v1316 = vpop.f32.mrb[0].mxu0
      %v1317 = vadd.f32 %v1008, %v1316
      %1318 = vmatprep.mubr.f32.mxu0 0.0
      %v1319 = vand.u32 %v357, 4294901760
      %v1320 = vsub.f32 %v357, %v1319
      %1321 = vmatmul.mubr.f32.gmra.mrb[0].mxu0 %v1320
      %v1322 = vpop.f32.mrb[0].mxu0
      %v1323 = vadd.f32 %v1013, %v1322
      %v1324 = vpop.f32.mrb[0].mxu0
      %v1325 = vadd.f32 %v1015, %v1324
      %1326 = vmatprep.mubr.f32.mxu0 0.0
      %v1327 = vand.u32 %v360, 4294901760
      %v1328 = vsub.f32 %v360, %v1327
      %1329 = vmatmul.mubr.f32.gmra.mrb[0].mxu0 %v1328
      %v1330 = vpop.f32.mrb[0].mxu0
      %v1331 = vadd.f32 %v1020, %v1330
      %v1332 = vpop.f32.mrb[0].mxu0
      %v1333 = vadd.f32 %v1022, %v1332
      %1334 = vmatprep.mubr.f32.mxu0 0.0
      %v1335 = vand.u32 %v363, 4294901760
      %v1336 = vsub.f32 %v363, %v1335
      %1337 = vmatmul.mubr.f32.gmra.mrb[0].mxu0 %v1336
      %v1338 = vpop.f32.mrb[0].mxu0
      %v1339 = vadd.f32 %v1027, %v1338
      %v1340 = vpop.f32.mrb[0].mxu0
      %v1341 = vadd.f32 %v1029, %v1340
      %1342 = vmatprep.mubr.f32.mxu0 0.0
      %v1343 = vand.u32 %v366, 4294901760
      %v1344 = vsub.f32 %v366, %v1343
      %1345 = vmatmul.mubr.f32.gmra.mrb[0].mxu0 %v1344
      %v1346 = vpop.f32.mrb[0].mxu0
      %v1347 = vadd.f32 %v1034, %v1346
      %v1348 = vpop.f32.mrb[0].mxu0
      %v1349 = vadd.f32 %v1036, %v1348
      %1350 = vmatprep.mubr.f32.mxu0 0.0
      %v1351 = vand.u32 %v369, 4294901760
      %v1352 = vsub.f32 %v369, %v1351
      %1353 = vmatmul.mubr.f32.gmra.mrb[0].mxu0 %v1352
      %v1354 = vpop.f32.mrb[0].mxu0
      %v1355 = vadd.f32 %v1041, %v1354
      %v1356 = vpop.f32.mrb[0].mxu0
      %v1357 = vadd.f32 %v1043, %v1356
      %1358 = vmatprep.mubr.f32.mxu0 0.0
      %v1359 = vand.u32 %v372, 4294901760
      %v1360 = vsub.f32 %v372, %v1359
      %1361 = vmatmul.mubr.f32.gmra.mrb[0].mxu0 %v1360
      %v1362 = vpop.f32.mrb[0].mxu0
      %v1363 = vadd.f32 %v1048, %v1362
      %v1364 = vpop.f32.mrb[0].mxu0
      %v1365 = vadd.f32 %v1050, %v1364
      %1366 = vmatprep.mubr.f32.mxu0 0.0
      %v1367 = vand.u32 %v375, 4294901760
      %v1368 = vsub.f32 %v375, %v1367
      %1369 = vmatmul.mubr.f32.gmra.mrb[0].mxu0 %v1368
      %v1370 = vpop.f32.mrb[0].mxu0
      %v1371 = vadd.f32 %v1055, %v1370
      %v1372 = vpop.f32.mrb[0].mxu0
      %v1373 = vadd.f32 %v1057, %v1372
      %1374 = vmatprep.mubr.f32.mxu0 0.0
      %v1375 = vand.u32 %v378, 4294901760
      %v1376 = vsub.f32 %v378, %v1375
      %1377 = vmatmul.mubr.f32.gmra.mrb[0].mxu0 %v1376
      %v1378 = vpop.f32.mrb[0].mxu0
      %v1379 = vadd.f32 %v1062, %v1378
      %v1380 = vpop.f32.mrb[0].mxu0
      %v1381 = vadd.f32 %v1064, %v1380
      %1382 = vmatprep.mubr.f32.mxu0 0.0
      %v1383 = vand.u32 %v381, 4294901760
      %v1384 = vsub.f32 %v381, %v1383
      %1385 = vmatmul.mubr.f32.gmra.mrb[0].mxu0 %v1384
      %v1386 = vpop.f32.mrb[0].mxu0
      %v1387 = vadd.f32 %v1069, %v1386
      %v1388 = vpop.f32.mrb[0].mxu0
      %v1389 = vadd.f32 %v1071, %v1388
      %1390 = vmatprep.mubr.f32.mxu0 0.0
      %v1391 = vand.u32 %v384, 4294901760
      %v1392 = vsub.f32 %v384, %v1391
      %1393 = vmatmul.mubr.f32.gmra.mrb[0].mxu0 %v1392
      %v1394 = vpop.f32.mrb[0].mxu0
      %v1395 = vadd.f32 %v1076, %v1394
      %v1396 = vpop.f32.mrb[0].mxu0
      %v1397 = vadd.f32 %v1078, %v1396
      %1398 = vmatprep.mubr.f32.mxu0 0.0
      %v1399 = vand.u32 %v387, 4294901760
      %v1400 = vsub.f32 %v387, %v1399
      %1401 = vmatmul.mubr.f32.gmra.mrb[0].mxu0 %v1400
      %v1402 = vpop.f32.mrb[0].mxu0
      %v1403 = vadd.f32 %v1083, %v1402
      %v1404 = vpop.f32.mrb[0].mxu0
      %v1405 = vadd.f32 %v1085, %v1404
      %1406 = vmatprep.mubr.f32.mxu0 0.0
      %v1407 = vand.u32 %v390, 4294901760
      %v1408 = vsub.f32 %v390, %v1407
      %1409 = vmatmul.mubr.f32.gmra.mrb[0].mxu0 %v1408
      %v1410 = vpop.f32.mrb[0].mxu0
      %v1411 = vadd.f32 %v1090, %v1410
      %v1412 = vpop.f32.mrb[0].mxu0
      %v1413 = vadd.f32 %v1092, %v1412
      %1414 = vmatprep.mubr.f32.mxu0 0.0
      %v1415 = vand.u32 %v393, 4294901760
      %v1416 = vsub.f32 %v393, %v1415
      %1417 = vmatmul.mubr.f32.gmra.mrb[0].mxu0 %v1416
      %v1418 = vpop.f32.mrb[0].mxu0
      %v1419 = vadd.f32 %v1097, %v1418
      %v1420 = vpop.f32.mrb[0].mxu0
      %v1421 = vadd.f32 %v1099, %v1420
      %1422 = vmatprep.mubr.f32.mxu0 0.0
      %v1423 = vand.u32 %v396, 4294901760
      %v1424 = vsub.f32 %v396, %v1423
      %1425 = vmatmul.mubr.f32.gmra.mrb[0].mxu0 %v1424
      %v1426 = vpop.f32.mrb[0].mxu0
      %v1427 = vadd.f32 %v1104, %v1426
      %v1428 = vpop.f32.mrb[0].mxu0
      %v1429 = vadd.f32 %v1106, %v1428
      %1430 = vmatprep.mubr.f32.mxu0 0.0
      %v1431 = vand.u32 %v399, 4294901760
      %v1432 = vsub.f32 %v399, %v1431
      %1433 = vmatmul.mubr.f32.gmra.mrb[0].mxu0 %v1432
      %v1434 = vpop.f32.mrb[0].mxu0
      %v1435 = vadd.f32 %v1111, %v1434
      %v1436 = vpop.f32.mrb[0].mxu0
      %v1437 = vadd.f32 %v1113, %v1436
      %1438 = vmatprep.mubr.f32.mxu0 0.0
      %v1439 = vand.u32 %v402, 4294901760
      %v1440 = vsub.f32 %v402, %v1439
      %1441 = vmatmul.mubr.f32.gmra.mrb[0].mxu0 %v1440
      %v1442 = vpop.f32.mrb[0].mxu0
      %v1443 = vadd.f32 %v1118, %v1442
      %v1444 = vpop.f32.mrb[0].mxu0
      %v1445 = vadd.f32 %v1120, %v1444
      %1446 = vdwg.mxu0
      %v1447 = vand.u32 %v242, 4294901760
      %1448 = vmatprep.subr.mxu0 %v1447
      %v1449 = vand.u32 %v241, 4294901760
      %1450 = vmatpush1.msra.mxu0 %v1449
      %1451 = vmatprep.subr.mxu0 0.0
      %1452 = vmatpush1.msra.mxu0 0.0
      %1453 = vmatprep.subr.mxu0 0.0
      %1454 = vmatpush1.msra.mxu0 0.0
      %1455 = vmatprep.subr.mxu0 0.0
      %1456 = vmatpush1.msra.mxu0 0.0
      %1457 = vmatprep.subr.mxu0 0.0
      %1458 = vmatpush1.msra.mxu0 0.0
      %1459 = vmatprep.subr.mxu0 0.0
      %1460 = vmatpush1.msra.mxu0 0.0
      %1461 = vmatprep.subr.mxu0 0.0
      %1462 = vmatpush1.msra.mxu0 0.0
      %1463 = vmatprep.subr.mxu0 0.0
      %1464 = vmatpush1.msra.mxu0 0.0
      %1465 = vmatprep.subr.mxu0 0.0
      %1466 = vmatpush1.msra.mxu0 0.0
      %1467 = vmatprep.subr.mxu0 0.0
      %1468 = vmatpush1.msra.mxu0 0.0
      %1469 = vmatprep.subr.mxu0 0.0
      %1470 = vmatpush1.msra.mxu0 0.0
      %1471 = vmatprep.subr.mxu0 0.0
      %1472 = vmatpush1.msra.mxu0 0.0
      %1473 = vmatprep.subr.mxu0 0.0
      %1474 = vmatpush1.msra.mxu0 0.0
      %1475 = vmatprep.subr.mxu0 0.0
      %1476 = vmatpush1.msra.mxu0 0.0
      %1477 = vmatprep.subr.mxu0 0.0
      %1478 = vmatpush1.msra.mxu0 0.0
      %1479 = vmatprep.subr.mxu0 0.0
      %1480 = vmatpush1.msra.mxu0 0.0
      %1481 = vmatprep.subr.mxu0 0.0
      %1482 = vmatpush1.msra.mxu0 0.0
      %1483 = vmatprep.subr.mxu0 0.0
      %1484 = vmatpush1.msra.mxu0 0.0
      %1485 = vmatprep.subr.mxu0 0.0
      %1486 = vmatpush1.msra.mxu0 0.0
      %1487 = vmatprep.subr.mxu0 0.0
      %1488 = vmatpush1.msra.mxu0 0.0
      %1489 = vmatprep.subr.mxu0 0.0
      %1490 = vmatpush1.msra.mxu0 0.0
      %1491 = vmatprep.subr.mxu0 0.0
      %1492 = vmatpush1.msra.mxu0 0.0
      %1493 = vmatprep.subr.mxu0 0.0
      %1494 = vmatpush1.msra.mxu0 0.0
      %1495 = vmatprep.subr.mxu0 0.0
      %1496 = vmatpush1.msra.mxu0 0.0
      %1497 = vmatprep.subr.mxu0 0.0
      %1498 = vmatpush1.msra.mxu0 0.0
      %1499 = vmatprep.subr.mxu0 0.0
      %1500 = vmatpush1.msra.mxu0 0.0
      %1501 = vmatprep.subr.mxu0 0.0
      %1502 = vmatpush1.msra.mxu0 0.0
      %1503 = vmatprep.subr.mxu0 0.0
      %1504 = vmatpush1.msra.mxu0 0.0
      %1505 = vmatprep.subr.mxu0 0.0
      %1506 = vmatpush1.msra.mxu0 0.0
      %1507 = vmatprep.subr.mxu0 0.0
      %1508 = vmatpush1.msra.mxu0 0.0
      %1509 = vmatprep.subr.mxu0 0.0
      %1510 = vmatpush1.msra.mxu0 0.0
      %1511 = vmatprep.subr.mxu0 0.0
      %1512 = vmatpush1.msra.mxu0 0.0
      %1513 = vmatprep.mubr.f32.mxu0 0.0
      %v1514 = vand.u32 %v309, 4294901760
      %v1515 = vsub.f32 %v309, %v1514
      %v1516 = vand.u32 %v1515, 4294901760
      %1517 = vmatmul.mubr.f32.gmra.mrb[0].mxu0 %v1516
      %v1518 = vpop.f32.mrb[0].mxu0
      %v1519 = vadd.f32 %v1195, %v1518
      %v1520 = vpop.f32.mrb[0].mxu0
      %v1521 = vadd.f32 %v1197, %v1520
      %1522 = vmatprep.mubr.f32.mxu0 0.0
      %v1523 = vand.u32 %v312, 4294901760
      %v1524 = vsub.f32 %v312, %v1523
      %v1525 = vand.u32 %v1524, 4294901760
      %1526 = vmatmul.mubr.f32.gmra.mrb[0].mxu0 %v1525
      %v1527 = vpop.f32.mrb[0].mxu0
      %v1528 = vadd.f32 %v1203, %v1527
      %v1529 = vpop.f32.mrb[0].mxu0
      %v1530 = vadd.f32 %v1205, %v1529
      %1531 = vmatprep.mubr.f32.mxu0 0.0
      %v1532 = vand.u32 %v315, 4294901760
      %v1533 = vsub.f32 %v315, %v1532
      %v1534 = vand.u32 %v1533, 4294901760
      %1535 = vmatmul.mubr.f32.gmra.mrb[0].mxu0 %v1534
      %v1536 = vpop.f32.mrb[0].mxu0
      %v1537 = vadd.f32 %v1211, %v1536
      %v1538 = vpop.f32.mrb[0].mxu0
      %v1539 = vadd.f32 %v1213, %v1538
      %1540 = vmatprep.mubr.f32.mxu0 0.0
      %v1541 = vand.u32 %v318, 4294901760
      %v1542 = vsub.f32 %v318, %v1541
      %v1543 = vand.u32 %v1542, 4294901760
      %1544 = vmatmul.mubr.f32.gmra.mrb[0].mxu0 %v1543
      %v1545 = vpop.f32.mrb[0].mxu0
      %v1546 = vadd.f32 %v1219, %v1545
      %v1547 = vpop.f32.mrb[0].mxu0
      %v1548 = vadd.f32 %v1221, %v1547
      %1549 = vmatprep.mubr.f32.mxu0 0.0
      %v1550 = vand.u32 %v321, 4294901760
      %v1551 = vsub.f32 %v321, %v1550
      %v1552 = vand.u32 %v1551, 4294901760
      %1553 = vmatmul.mubr.f32.gmra.mrb[0].mxu0 %v1552
      %v1554 = vpop.f32.mrb[0].mxu0
      %v1555 = vadd.f32 %v1227, %v1554
      %v1556 = vpop.f32.mrb[0].mxu0
      %v1557 = vadd.f32 %v1229, %v1556
      %1558 = vmatprep.mubr.f32.mxu0 0.0
      %v1559 = vand.u32 %v324, 4294901760
      %v1560 = vsub.f32 %v324, %v1559
      %v1561 = vand.u32 %v1560, 4294901760
      %1562 = vmatmul.mubr.f32.gmra.mrb[0].mxu0 %v1561
      %v1563 = vpop.f32.mrb[0].mxu0
      %v1564 = vadd.f32 %v1235, %v1563
      %v1565 = vpop.f32.mrb[0].mxu0
      %v1566 = vadd.f32 %v1237, %v1565
      %1567 = vmatprep.mubr.f32.mxu0 0.0
      %v1568 = vand.u32 %v327, 4294901760
      %v1569 = vsub.f32 %v327, %v1568
      %v1570 = vand.u32 %v1569, 4294901760
      %1571 = vmatmul.mubr.f32.gmra.mrb[0].mxu0 %v1570
      %v1572 = vpop.f32.mrb[0].mxu0
      %v1573 = vadd.f32 %v1243, %v1572
      %v1574 = vpop.f32.mrb[0].mxu0
      %v1575 = vadd.f32 %v1245, %v1574
      %1576 = vmatprep.mubr.f32.mxu0 0.0
      %v1577 = vand.u32 %v330, 4294901760
      %v1578 = vsub.f32 %v330, %v1577
      %v1579 = vand.u32 %v1578, 4294901760
      %1580 = vmatmul.mubr.f32.gmra.mrb[0].mxu0 %v1579
      %v1581 = vpop.f32.mrb[0].mxu0
      %v1582 = vadd.f32 %v1251, %v1581
      %v1583 = vpop.f32.mrb[0].mxu0
      %v1584 = vadd.f32 %v1253, %v1583
      %1585 = vmatprep.mubr.f32.mxu0 0.0
      %v1586 = vand.u32 %v333, 4294901760
      %v1587 = vsub.f32 %v333, %v1586
      %v1588 = vand.u32 %v1587, 4294901760
      %1589 = vmatmul.mubr.f32.gmra.mrb[0].mxu0 %v1588
      %v1590 = vpop.f32.mrb[0].mxu0
      %v1591 = vadd.f32 %v1259, %v1590
      %v1592 = vpop.f32.mrb[0].mxu0
      %v1593 = vadd.f32 %v1261, %v1592
      %1594 = vmatprep.mubr.f32.mxu0 0.0
      %v1595 = vand.u32 %v336, 4294901760
      %v1596 = vsub.f32 %v336, %v1595
      %v1597 = vand.u32 %v1596, 4294901760
      %1598 = vmatmul.mubr.f32.gmra.mrb[0].mxu0 %v1597
      %v1599 = vpop.f32.mrb[0].mxu0
      %v1600 = vadd.f32 %v1267, %v1599
      %v1601 = vpop.f32.mrb[0].mxu0
      %v1602 = vadd.f32 %v1269, %v1601
      %1603 = vmatprep.mubr.f32.mxu0 0.0
      %v1604 = vand.u32 %v339, 4294901760
      %v1605 = vsub.f32 %v339, %v1604
      %v1606 = vand.u32 %v1605, 4294901760
      %1607 = vmatmul.mubr.f32.gmra.mrb[0].mxu0 %v1606
      %v1608 = vpop.f32.mrb[0].mxu0
      %v1609 = vadd.f32 %v1275, %v1608
      %v1610 = vpop.f32.mrb[0].mxu0
      %v1611 = vadd.f32 %v1277, %v1610
      %1612 = vmatprep.mubr.f32.mxu0 0.0
      %v1613 = vand.u32 %v342, 4294901760
      %v1614 = vsub.f32 %v342, %v1613
      %v1615 = vand.u32 %v1614, 4294901760
      %1616 = vmatmul.mubr.f32.gmra.mrb[0].mxu0 %v1615
      %v1617 = vpop.f32.mrb[0].mxu0
      %v1618 = vadd.f32 %v1283, %v1617
      %v1619 = vpop.f32.mrb[0].mxu0
      %v1620 = vadd.f32 %v1285, %v1619
      %1621 = vmatprep.mubr.f32.mxu0 0.0
      %v1622 = vand.u32 %v345, 4294901760
      %v1623 = vsub.f32 %v345, %v1622
      %v1624 = vand.u32 %v1623, 4294901760
      %1625 = vmatmul.mubr.f32.gmra.mrb[0].mxu0 %v1624
      %v1626 = vpop.f32.mrb[0].mxu0
      %v1627 = vadd.f32 %v1291, %v1626
      %v1628 = vpop.f32.mrb[0].mxu0
      %v1629 = vadd.f32 %v1293, %v1628
      %1630 = vmatprep.mubr.f32.mxu0 0.0
      %v1631 = vand.u32 %v348, 4294901760
      %v1632 = vsub.f32 %v348, %v1631
      %v1633 = vand.u32 %v1632, 4294901760
      %1634 = vmatmul.mubr.f32.gmra.mrb[0].mxu0 %v1633
      %v1635 = vpop.f32.mrb[0].mxu0
      %v1636 = vadd.f32 %v1299, %v1635
      %v1637 = vpop.f32.mrb[0].mxu0
      %v1638 = vadd.f32 %v1301, %v1637
      %1639 = vmatprep.mubr.f32.mxu0 0.0
      %v1640 = vand.u32 %v351, 4294901760
      %v1641 = vsub.f32 %v351, %v1640
      %v1642 = vand.u32 %v1641, 4294901760
      %1643 = vmatmul.mubr.f32.gmra.mrb[0].mxu0 %v1642
      %v1644 = vpop.f32.mrb[0].mxu0
      %v1645 = vadd.f32 %v1307, %v1644
      %v1646 = vpop.f32.mrb[0].mxu0
      %v1647 = vadd.f32 %v1309, %v1646
      %1648 = vmatprep.mubr.f32.mxu0 0.0
      %v1649 = vand.u32 %v354, 4294901760
      %v1650 = vsub.f32 %v354, %v1649
      %v1651 = vand.u32 %v1650, 4294901760
      %1652 = vmatmul.mubr.f32.gmra.mrb[0].mxu0 %v1651
      %v1653 = vpop.f32.mrb[0].mxu0
      %v1654 = vadd.f32 %v1315, %v1653
      %v1655 = vpop.f32.mrb[0].mxu0
      %v1656 = vadd.f32 %v1317, %v1655
      %1657 = vmatprep.mubr.f32.mxu0 0.0
      %v1658 = vand.u32 %v357, 4294901760
      %v1659 = vsub.f32 %v357, %v1658
      %v1660 = vand.u32 %v1659, 4294901760
      %1661 = vmatmul.mubr.f32.gmra.mrb[0].mxu0 %v1660
      %v1662 = vpop.f32.mrb[0].mxu0
      %v1663 = vadd.f32 %v1323, %v1662
      %v1664 = vpop.f32.mrb[0].mxu0
      %v1665 = vadd.f32 %v1325, %v1664
      %1666 = vmatprep.mubr.f32.mxu0 0.0
      %v1667 = vand.u32 %v360, 4294901760
      %v1668 = vsub.f32 %v360, %v1667
      %v1669 = vand.u32 %v1668, 4294901760
      %1670 = vmatmul.mubr.f32.gmra.mrb[0].mxu0 %v1669
      %v1671 = vpop.f32.mrb[0].mxu0
      %v1672 = vadd.f32 %v1331, %v1671
      %v1673 = vpop.f32.mrb[0].mxu0
      %v1674 = vadd.f32 %v1333, %v1673
      %1675 = vmatprep.mubr.f32.mxu0 0.0
      %v1676 = vand.u32 %v363, 4294901760
      %v1677 = vsub.f32 %v363, %v1676
      %v1678 = vand.u32 %v1677, 4294901760
      %1679 = vmatmul.mubr.f32.gmra.mrb[0].mxu0 %v1678
      %v1680 = vpop.f32.mrb[0].mxu0
      %v1681 = vadd.f32 %v1339, %v1680
      %v1682 = vpop.f32.mrb[0].mxu0
      %v1683 = vadd.f32 %v1341, %v1682
      %1684 = vmatprep.mubr.f32.mxu0 0.0
      %v1685 = vand.u32 %v366, 4294901760
      %v1686 = vsub.f32 %v366, %v1685
      %v1687 = vand.u32 %v1686, 4294901760
      %1688 = vmatmul.mubr.f32.gmra.mrb[0].mxu0 %v1687
      %v1689 = vpop.f32.mrb[0].mxu0
      %v1690 = vadd.f32 %v1347, %v1689
      %v1691 = vpop.f32.mrb[0].mxu0
      %v1692 = vadd.f32 %v1349, %v1691
      %1693 = vmatprep.mubr.f32.mxu0 0.0
      %v1694 = vand.u32 %v369, 4294901760
      %v1695 = vsub.f32 %v369, %v1694
      %v1696 = vand.u32 %v1695, 4294901760
      %1697 = vmatmul.mubr.f32.gmra.mrb[0].mxu0 %v1696
      %v1698 = vpop.f32.mrb[0].mxu0
      %v1699 = vadd.f32 %v1355, %v1698
      %v1700 = vpop.f32.mrb[0].mxu0
      %v1701 = vadd.f32 %v1357, %v1700
      %1702 = vmatprep.mubr.f32.mxu0 0.0
      %v1703 = vand.u32 %v372, 4294901760
      %v1704 = vsub.f32 %v372, %v1703
      %v1705 = vand.u32 %v1704, 4294901760
      %1706 = vmatmul.mubr.f32.gmra.mrb[0].mxu0 %v1705
      %v1707 = vpop.f32.mrb[0].mxu0
      %v1708 = vadd.f32 %v1363, %v1707
      %v1709 = vpop.f32.mrb[0].mxu0
      %v1710 = vadd.f32 %v1365, %v1709
      %1711 = vmatprep.mubr.f32.mxu0 0.0
      %v1712 = vand.u32 %v375, 4294901760
      %v1713 = vsub.f32 %v375, %v1712
      %v1714 = vand.u32 %v1713, 4294901760
      %1715 = vmatmul.mubr.f32.gmra.mrb[0].mxu0 %v1714
      %v1716 = vpop.f32.mrb[0].mxu0
      %v1717 = vadd.f32 %v1371, %v1716
      %v1718 = vpop.f32.mrb[0].mxu0
      %v1719 = vadd.f32 %v1373, %v1718
      %1720 = vmatprep.mubr.f32.mxu0 0.0
      %v1721 = vand.u32 %v378, 4294901760
      %v1722 = vsub.f32 %v378, %v1721
      %v1723 = vand.u32 %v1722, 4294901760
      %1724 = vmatmul.mubr.f32.gmra.mrb[0].mxu0 %v1723
      %v1725 = vpop.f32.mrb[0].mxu0
      %v1726 = vadd.f32 %v1379, %v1725
      %v1727 = vpop.f32.mrb[0].mxu0
      %v1728 = vadd.f32 %v1381, %v1727
      %1729 = vmatprep.mubr.f32.mxu0 0.0
      %v1730 = vand.u32 %v381, 4294901760
      %v1731 = vsub.f32 %v381, %v1730
      %v1732 = vand.u32 %v1731, 4294901760
      %1733 = vmatmul.mubr.f32.gmra.mrb[0].mxu0 %v1732
      %v1734 = vpop.f32.mrb[0].mxu0
      %v1735 = vadd.f32 %v1387, %v1734
      %v1736 = vpop.f32.mrb[0].mxu0
      %v1737 = vadd.f32 %v1389, %v1736
      %1738 = vmatprep.mubr.f32.mxu0 0.0
      %v1739 = vand.u32 %v384, 4294901760
      %v1740 = vsub.f32 %v384, %v1739
      %v1741 = vand.u32 %v1740, 4294901760
      %1742 = vmatmul.mubr.f32.gmra.mrb[0].mxu0 %v1741
      %v1743 = vpop.f32.mrb[0].mxu0
      %v1744 = vadd.f32 %v1395, %v1743
      %v1745 = vpop.f32.mrb[0].mxu0
      %v1746 = vadd.f32 %v1397, %v1745
      %1747 = vmatprep.mubr.f32.mxu0 0.0
      %v1748 = vand.u32 %v387, 4294901760
      %v1749 = vsub.f32 %v387, %v1748
      %v1750 = vand.u32 %v1749, 4294901760
      %1751 = vmatmul.mubr.f32.gmra.mrb[0].mxu0 %v1750
      %v1752 = vpop.f32.mrb[0].mxu0
      %v1753 = vadd.f32 %v1403, %v1752
      %v1754 = vpop.f32.mrb[0].mxu0
      %v1755 = vadd.f32 %v1405, %v1754
      %1756 = vmatprep.mubr.f32.mxu0 0.0
      %v1757 = vand.u32 %v390, 4294901760
      %v1758 = vsub.f32 %v390, %v1757
      %v1759 = vand.u32 %v1758, 4294901760
      %1760 = vmatmul.mubr.f32.gmra.mrb[0].mxu0 %v1759
      %v1761 = vpop.f32.mrb[0].mxu0
      %v1762 = vadd.f32 %v1411, %v1761
      %v1763 = vpop.f32.mrb[0].mxu0
      %v1764 = vadd.f32 %v1413, %v1763
      %1765 = vmatprep.mubr.f32.mxu0 0.0
      %v1766 = vand.u32 %v393, 4294901760
      %v1767 = vsub.f32 %v393, %v1766
      %v1768 = vand.u32 %v1767, 4294901760
      %1769 = vmatmul.mubr.f32.gmra.mrb[0].mxu0 %v1768
      %v1770 = vpop.f32.mrb[0].mxu0
      %v1771 = vadd.f32 %v1419, %v1770
      %v1772 = vpop.f32.mrb[0].mxu0
      %v1773 = vadd.f32 %v1421, %v1772
      %1774 = vmatprep.mubr.f32.mxu0 0.0
      %v1775 = vand.u32 %v396, 4294901760
      %v1776 = vsub.f32 %v396, %v1775
      %v1777 = vand.u32 %v1776, 4294901760
      %1778 = vmatmul.mubr.f32.gmra.mrb[0].mxu0 %v1777
      %v1779 = vpop.f32.mrb[0].mxu0
      %v1780 = vadd.f32 %v1427, %v1779
      %v1781 = vpop.f32.mrb[0].mxu0
      %v1782 = vadd.f32 %v1429, %v1781
      %1783 = vmatprep.mubr.f32.mxu0 0.0
      %v1784 = vand.u32 %v399, 4294901760
      %v1785 = vsub.f32 %v399, %v1784
      %v1786 = vand.u32 %v1785, 4294901760
      %1787 = vmatmul.mubr.f32.gmra.mrb[0].mxu0 %v1786
      %v1788 = vpop.f32.mrb[0].mxu0
      %v1789 = vadd.f32 %v1435, %v1788
      %v1790 = vpop.f32.mrb[0].mxu0
      %v1791 = vadd.f32 %v1437, %v1790
      %1792 = vmatprep.mubr.f32.mxu0 0.0
      %v1793 = vand.u32 %v402, 4294901760
      %v1794 = vsub.f32 %v402, %v1793
      %v1795 = vand.u32 %v1794, 4294901760
      %1796 = vmatmul.mubr.f32.gmra.mrb[0].mxu0 %v1795
      %v1797 = vpop.f32.mrb[0].mxu0
      %v1798 = vadd.f32 %v1443, %v1797
      %v1799 = vpop.f32.mrb[0].mxu0
      %v1800 = vadd.f32 %v1445, %v1799
      %1801 = vdwg.mxu0
      %v1802 = vand.u32 %v242, 4294901760
      %v1803 = vsub.f32 %v242, %v1802
      %v1804 = vand.u32 %v1803, 4294901760
      %1805 = vmatprep.subr.mxu0 %v1804
      %v1806 = vand.u32 %v241, 4294901760
      %v1807 = vsub.f32 %v241, %v1806
      %v1808 = vand.u32 %v1807, 4294901760
      %1809 = vmatpush1.msra.mxu0 %v1808
      %1810 = vmatprep.subr.mxu0 0.0
      %1811 = vmatpush1.msra.mxu0 0.0
      %1812 = vmatprep.subr.mxu0 0.0
      %1813 = vmatpush1.msra.mxu0 0.0
      %1814 = vmatprep.subr.mxu0 0.0
      %1815 = vmatpush1.msra.mxu0 0.0
      %1816 = vmatprep.subr.mxu0 0.0
      %1817 = vmatpush1.msra.mxu0 0.0
      %1818 = vmatprep.subr.mxu0 0.0
      %1819 = vmatpush1.msra.mxu0 0.0
      %1820 = vmatprep.subr.mxu0 0.0
      %1821 = vmatpush1.msra.mxu0 0.0
      %1822 = vmatprep.subr.mxu0 0.0
      %1823 = vmatpush1.msra.mxu0 0.0
      %1824 = vmatprep.subr.mxu0 0.0
      %1825 = vmatpush1.msra.mxu0 0.0
      %1826 = vmatprep.subr.mxu0 0.0
      %1827 = vmatpush1.msra.mxu0 0.0
      %1828 = vmatprep.subr.mxu0 0.0
      %1829 = vmatpush1.msra.mxu0 0.0
      %1830 = vmatprep.subr.mxu0 0.0
      %1831 = vmatpush1.msra.mxu0 0.0
      %1832 = vmatprep.subr.mxu0 0.0
      %1833 = vmatpush1.msra.mxu0 0.0
      %1834 = vmatprep.subr.mxu0 0.0
      %1835 = vmatpush1.msra.mxu0 0.0
      %1836 = vmatprep.subr.mxu0 0.0
      %1837 = vmatpush1.msra.mxu0 0.0
      %1838 = vmatprep.subr.mxu0 0.0
      %1839 = vmatpush1.msra.mxu0 0.0
      %1840 = vmatprep.subr.mxu0 0.0
      %1841 = vmatpush1.msra.mxu0 0.0
      %1842 = vmatprep.subr.mxu0 0.0
      %1843 = vmatpush1.msra.mxu0 0.0
      %1844 = vmatprep.subr.mxu0 0.0
      %1845 = vmatpush1.msra.mxu0 0.0
      %1846 = vmatprep.subr.mxu0 0.0
      %1847 = vmatpush1.msra.mxu0 0.0
      %1848 = vmatprep.subr.mxu0 0.0
      %1849 = vmatpush1.msra.mxu0 0.0
      %1850 = vmatprep.subr.mxu0 0.0
      %1851 = vmatpush1.msra.mxu0 0.0
      %1852 = vmatprep.subr.mxu0 0.0
      %1853 = vmatpush1.msra.mxu0 0.0
      %1854 = vmatprep.subr.mxu0 0.0
      %1855 = vmatpush1.msra.mxu0 0.0
      %1856 = vmatprep.subr.mxu0 0.0
      %1857 = vmatpush1.msra.mxu0 0.0
      %1858 = vmatprep.subr.mxu0 0.0
      %1859 = vmatpush1.msra.mxu0 0.0
      %1860 = vmatprep.subr.mxu0 0.0
      %1861 = vmatpush1.msra.mxu0 0.0
      %1862 = vmatprep.subr.mxu0 0.0
      %1863 = vmatpush1.msra.mxu0 0.0
      %1864 = vmatprep.subr.mxu0 0.0
      %1865 = vmatpush1.msra.mxu0 0.0
      %1866 = vmatprep.subr.mxu0 0.0
      %1867 = vmatpush1.msra.mxu0 0.0
      %1868 = vmatprep.subr.mxu0 0.0
      %1869 = vmatpush1.msra.mxu0 0.0
      %1870 = vmatprep.subr.mxu0 0.0
      %1871 = vmatpush1.msra.mxu0 0.0
      %1872 = vmatprep.mubr.f32.mxu0 0.0
      %v1873 = vand.u32 %v309, 4294901760
      %1874 = vmatmul.mubr.f32.gmra.mrb[0].mxu0 %v1873
      %v1875 = vpop.f32.mrb[0].mxu0
      %v1876 = vadd.f32 %v1519, %v1875
      %v1877 = vpop.f32.mrb[0].mxu0
      %v1878 = vadd.f32 %v1521, %v1877
      %1879 = vmatprep.mubr.f32.mxu0 0.0
      %v1880 = vand.u32 %v312, 4294901760
      %1881 = vmatmul.mubr.f32.gmra.mrb[0].mxu0 %v1880
      %v1882 = vpop.f32.mrb[0].mxu0
      %v1883 = vadd.f32 %v1528, %v1882
      %v1884 = vpop.f32.mrb[0].mxu0
      %v1885 = vadd.f32 %v1530, %v1884
      %1886 = vmatprep.mubr.f32.mxu0 0.0
      %v1887 = vand.u32 %v315, 4294901760
      %1888 = vmatmul.mubr.f32.gmra.mrb[0].mxu0 %v1887
      %v1889 = vpop.f32.mrb[0].mxu0
      %v1890 = vadd.f32 %v1537, %v1889
      %v1891 = vpop.f32.mrb[0].mxu0
      %v1892 = vadd.f32 %v1539, %v1891
      %1893 = vmatprep.mubr.f32.mxu0 0.0
      %v1894 = vand.u32 %v318, 4294901760
      %1895 = vmatmul.mubr.f32.gmra.mrb[0].mxu0 %v1894
      %v1896 = vpop.f32.mrb[0].mxu0
      %v1897 = vadd.f32 %v1546, %v1896
      %v1898 = vpop.f32.mrb[0].mxu0
      %v1899 = vadd.f32 %v1548, %v1898
      %1900 = vmatprep.mubr.f32.mxu0 0.0
      %v1901 = vand.u32 %v321, 4294901760
      %1902 = vmatmul.mubr.f32.gmra.mrb[0].mxu0 %v1901
      %v1903 = vpop.f32.mrb[0].mxu0
      %v1904 = vadd.f32 %v1555, %v1903
      %v1905 = vpop.f32.mrb[0].mxu0
      %v1906 = vadd.f32 %v1557, %v1905
      %1907 = vmatprep.mubr.f32.mxu0 0.0
      %v1908 = vand.u32 %v324, 4294901760
      %1909 = vmatmul.mubr.f32.gmra.mrb[0].mxu0 %v1908
      %v1910 = vpop.f32.mrb[0].mxu0
      %v1911 = vadd.f32 %v1564, %v1910
      %v1912 = vpop.f32.mrb[0].mxu0
      %v1913 = vadd.f32 %v1566, %v1912
      %1914 = vmatprep.mubr.f32.mxu0 0.0
      %v1915 = vand.u32 %v327, 4294901760
      %1916 = vmatmul.mubr.f32.gmra.mrb[0].mxu0 %v1915
      %v1917 = vpop.f32.mrb[0].mxu0
      %v1918 = vadd.f32 %v1573, %v1917
      %v1919 = vpop.f32.mrb[0].mxu0
      %v1920 = vadd.f32 %v1575, %v1919
      %1921 = vmatprep.mubr.f32.mxu0 0.0
      %v1922 = vand.u32 %v330, 4294901760
      %1923 = vmatmul.mubr.f32.gmra.mrb[0].mxu0 %v1922
      %v1924 = vpop.f32.mrb[0].mxu0
      %v1925 = vadd.f32 %v1582, %v1924
      %v1926 = vpop.f32.mrb[0].mxu0
      %v1927 = vadd.f32 %v1584, %v1926
      %1928 = vmatprep.mubr.f32.mxu0 0.0
      %v1929 = vand.u32 %v333, 4294901760
      %1930 = vmatmul.mubr.f32.gmra.mrb[0].mxu0 %v1929
      %v1931 = vpop.f32.mrb[0].mxu0
      %v1932 = vadd.f32 %v1591, %v1931
      %v1933 = vpop.f32.mrb[0].mxu0
      %v1934 = vadd.f32 %v1593, %v1933
      %1935 = vmatprep.mubr.f32.mxu0 0.0
      %v1936 = vand.u32 %v336, 4294901760
      %1937 = vmatmul.mubr.f32.gmra.mrb[0].mxu0 %v1936
      %v1938 = vpop.f32.mrb[0].mxu0
      %v1939 = vadd.f32 %v1600, %v1938
      %v1940 = vpop.f32.mrb[0].mxu0
      %v1941 = vadd.f32 %v1602, %v1940
      %1942 = vmatprep.mubr.f32.mxu0 0.0
      %v1943 = vand.u32 %v339, 4294901760
      %1944 = vmatmul.mubr.f32.gmra.mrb[0].mxu0 %v1943
      %v1945 = vpop.f32.mrb[0].mxu0
      %v1946 = vadd.f32 %v1609, %v1945
      %v1947 = vpop.f32.mrb[0].mxu0
      %v1948 = vadd.f32 %v1611, %v1947
      %1949 = vmatprep.mubr.f32.mxu0 0.0
      %v1950 = vand.u32 %v342, 4294901760
      %1951 = vmatmul.mubr.f32.gmra.mrb[0].mxu0 %v1950
      %v1952 = vpop.f32.mrb[0].mxu0
      %v1953 = vadd.f32 %v1618, %v1952
      %v1954 = vpop.f32.mrb[0].mxu0
      %v1955 = vadd.f32 %v1620, %v1954
      %1956 = vmatprep.mubr.f32.mxu0 0.0
      %v1957 = vand.u32 %v345, 4294901760
      %1958 = vmatmul.mubr.f32.gmra.mrb[0].mxu0 %v1957
      %v1959 = vpop.f32.mrb[0].mxu0
      %v1960 = vadd.f32 %v1627, %v1959
      %v1961 = vpop.f32.mrb[0].mxu0
      %v1962 = vadd.f32 %v1629, %v1961
      %1963 = vmatprep.mubr.f32.mxu0 0.0
      %v1964 = vand.u32 %v348, 4294901760
      %1965 = vmatmul.mubr.f32.gmra.mrb[0].mxu0 %v1964
      %v1966 = vpop.f32.mrb[0].mxu0
      %v1967 = vadd.f32 %v1636, %v1966
      %v1968 = vpop.f32.mrb[0].mxu0
      %v1969 = vadd.f32 %v1638, %v1968
      %1970 = vmatprep.mubr.f32.mxu0 0.0
      %v1971 = vand.u32 %v351, 4294901760
      %1972 = vmatmul.mubr.f32.gmra.mrb[0].mxu0 %v1971
      %v1973 = vpop.f32.mrb[0].mxu0
      %v1974 = vadd.f32 %v1645, %v1973
      %v1975 = vpop.f32.mrb[0].mxu0
      %v1976 = vadd.f32 %v1647, %v1975
      %1977 = vmatprep.mubr.f32.mxu0 0.0
      %v1978 = vand.u32 %v354, 4294901760
      %1979 = vmatmul.mubr.f32.gmra.mrb[0].mxu0 %v1978
      %v1980 = vpop.f32.mrb[0].mxu0
      %v1981 = vadd.f32 %v1654, %v1980
      %v1982 = vpop.f32.mrb[0].mxu0
      %v1983 = vadd.f32 %v1656, %v1982
      %1984 = vmatprep.mubr.f32.mxu0 0.0
      %v1985 = vand.u32 %v357, 4294901760
      %1986 = vmatmul.mubr.f32.gmra.mrb[0].mxu0 %v1985
      %v1987 = vpop.f32.mrb[0].mxu0
      %v1988 = vadd.f32 %v1663, %v1987
      %v1989 = vpop.f32.mrb[0].mxu0
      %v1990 = vadd.f32 %v1665, %v1989
      %1991 = vmatprep.mubr.f32.mxu0 0.0
      %v1992 = vand.u32 %v360, 4294901760
      %1993 = vmatmul.mubr.f32.gmra.mrb[0].mxu0 %v1992
      %v1994 = vpop.f32.mrb[0].mxu0
      %v1995 = vadd.f32 %v1672, %v1994
      %v1996 = vpop.f32.mrb[0].mxu0
      %v1997 = vadd.f32 %v1674, %v1996
      %1998 = vmatprep.mubr.f32.mxu0 0.0
      %v1999 = vand.u32 %v363, 4294901760
      %2000 = vmatmul.mubr.f32.gmra.mrb[0].mxu0 %v1999
      %v2001 = vpop.f32.mrb[0].mxu0
      %v2002 = vadd.f32 %v1681, %v2001
      %v2003 = vpop.f32.mrb[0].mxu0
      %v2004 = vadd.f32 %v1683, %v2003
      %2005 = vmatprep.mubr.f32.mxu0 0.0
      %v2006 = vand.u32 %v366, 4294901760
      %2007 = vmatmul.mubr.f32.gmra.mrb[0].mxu0 %v2006
      %v2008 = vpop.f32.mrb[0].mxu0
      %v2009 = vadd.f32 %v1690, %v2008
      %v2010 = vpop.f32.mrb[0].mxu0
      %v2011 = vadd.f32 %v1692, %v2010
      %2012 = vmatprep.mubr.f32.mxu0 0.0
      %v2013 = vand.u32 %v369, 4294901760
      %2014 = vmatmul.mubr.f32.gmra.mrb[0].mxu0 %v2013
      %v2015 = vpop.f32.mrb[0].mxu0
      %v2016 = vadd.f32 %v1699, %v2015
      %v2017 = vpop.f32.mrb[0].mxu0
      %v2018 = vadd.f32 %v1701, %v2017
      %2019 = vmatprep.mubr.f32.mxu0 0.0
      %v2020 = vand.u32 %v372, 4294901760
      %2021 = vmatmul.mubr.f32.gmra.mrb[0].mxu0 %v2020
      %v2022 = vpop.f32.mrb[0].mxu0
      %v2023 = vadd.f32 %v1708, %v2022
      %v2024 = vpop.f32.mrb[0].mxu0
      %v2025 = vadd.f32 %v1710, %v2024
      %2026 = vmatprep.mubr.f32.mxu0 0.0
      %v2027 = vand.u32 %v375, 4294901760
      %2028 = vmatmul.mubr.f32.gmra.mrb[0].mxu0 %v2027
      %v2029 = vpop.f32.mrb[0].mxu0
      %v2030 = vadd.f32 %v1717, %v2029
      %v2031 = vpop.f32.mrb[0].mxu0
      %v2032 = vadd.f32 %v1719, %v2031
      %2033 = vmatprep.mubr.f32.mxu0 0.0
      %v2034 = vand.u32 %v378, 4294901760
      %2035 = vmatmul.mubr.f32.gmra.mrb[0].mxu0 %v2034
      %v2036 = vpop.f32.mrb[0].mxu0
      %v2037 = vadd.f32 %v1726, %v2036
      %v2038 = vpop.f32.mrb[0].mxu0
      %v2039 = vadd.f32 %v1728, %v2038
      %2040 = vmatprep.mubr.f32.mxu0 0.0
      %v2041 = vand.u32 %v381, 4294901760
      %2042 = vmatmul.mubr.f32.gmra.mrb[0].mxu0 %v2041
      %v2043 = vpop.f32.mrb[0].mxu0
      %v2044 = vadd.f32 %v1735, %v2043
      %v2045 = vpop.f32.mrb[0].mxu0
      %v2046 = vadd.f32 %v1737, %v2045
      %2047 = vmatprep.mubr.f32.mxu0 0.0
      %v2048 = vand.u32 %v384, 4294901760
      %2049 = vmatmul.mubr.f32.gmra.mrb[0].mxu0 %v2048
      %v2050 = vpop.f32.mrb[0].mxu0
      %v2051 = vadd.f32 %v1744, %v2050
      %v2052 = vpop.f32.mrb[0].mxu0
      %v2053 = vadd.f32 %v1746, %v2052
      %2054 = vmatprep.mubr.f32.mxu0 0.0
      %v2055 = vand.u32 %v387, 4294901760
      %2056 = vmatmul.mubr.f32.gmra.mrb[0].mxu0 %v2055
      %v2057 = vpop.f32.mrb[0].mxu0
      %v2058 = vadd.f32 %v1753, %v2057
      %v2059 = vpop.f32.mrb[0].mxu0
      %v2060 = vadd.f32 %v1755, %v2059
      %2061 = vmatprep.mubr.f32.mxu0 0.0
      %v2062 = vand.u32 %v390, 4294901760
      %2063 = vmatmul.mubr.f32.gmra.mrb[0].mxu0 %v2062
      %v2064 = vpop.f32.mrb[0].mxu0
      %v2065 = vadd.f32 %v1762, %v2064
      %v2066 = vpop.f32.mrb[0].mxu0
      %v2067 = vadd.f32 %v1764, %v2066
      %2068 = vmatprep.mubr.f32.mxu0 0.0
      %v2069 = vand.u32 %v393, 4294901760
      %2070 = vmatmul.mubr.f32.gmra.mrb[0].mxu0 %v2069
      %v2071 = vpop.f32.mrb[0].mxu0
      %v2072 = vadd.f32 %v1771, %v2071
      %v2073 = vpop.f32.mrb[0].mxu0
      %v2074 = vadd.f32 %v1773, %v2073
      %2075 = vmatprep.mubr.f32.mxu0 0.0
      %v2076 = vand.u32 %v396, 4294901760
      %2077 = vmatmul.mubr.f32.gmra.mrb[0].mxu0 %v2076
      %v2078 = vpop.f32.mrb[0].mxu0
      %v2079 = vadd.f32 %v1780, %v2078
      %v2080 = vpop.f32.mrb[0].mxu0
      %v2081 = vadd.f32 %v1782, %v2080
      %2082 = vmatprep.mubr.f32.mxu0 0.0
      %v2083 = vand.u32 %v399, 4294901760
      %2084 = vmatmul.mubr.f32.gmra.mrb[0].mxu0 %v2083
      %v2085 = vpop.f32.mrb[0].mxu0
      %v2086 = vadd.f32 %v1789, %v2085
      %v2087 = vpop.f32.mrb[0].mxu0
      %v2088 = vadd.f32 %v1791, %v2087
      %2089 = vmatprep.mubr.f32.mxu0 0.0
      %v2090 = vand.u32 %v402, 4294901760
      %2091 = vmatmul.mubr.f32.gmra.mrb[0].mxu0 %v2090
      %v2092 = vpop.f32.mrb[0].mxu0
      %v2093 = vadd.f32 %v1798, %v2092
      %v2094 = vpop.f32.mrb[0].mxu0
      %v2095 = vadd.f32 %v1800, %v2094
      %2096 = vdwg.mxu0
      %v2097 = vand.u32 %v242, 4294901760
      %2098 = vmatprep.subr.mxu0 %v2097
      %v2099 = vand.u32 %v241, 4294901760
      %2100 = vmatpush1.msra.mxu0 %v2099
      %2101 = vmatprep.subr.mxu0 0.0
      %2102 = vmatpush1.msra.mxu0 0.0
      %2103 = vmatprep.subr.mxu0 0.0
      %2104 = vmatpush1.msra.mxu0 0.0
      %2105 = vmatprep.subr.mxu0 0.0
      %2106 = vmatpush1.msra.mxu0 0.0
      %2107 = vmatprep.subr.mxu0 0.0
      %2108 = vmatpush1.msra.mxu0 0.0
      %2109 = vmatprep.subr.mxu0 0.0
      %2110 = vmatpush1.msra.mxu0 0.0
      %2111 = vmatprep.subr.mxu0 0.0
      %2112 = vmatpush1.msra.mxu0 0.0
      %2113 = vmatprep.subr.mxu0 0.0
      %2114 = vmatpush1.msra.mxu0 0.0
      %2115 = vmatprep.subr.mxu0 0.0
      %2116 = vmatpush1.msra.mxu0 0.0
      %2117 = vmatprep.subr.mxu0 0.0
      %2118 = vmatpush1.msra.mxu0 0.0
      %2119 = vmatprep.subr.mxu0 0.0
      %2120 = vmatpush1.msra.mxu0 0.0
      %2121 = vmatprep.subr.mxu0 0.0
      %2122 = vmatpush1.msra.mxu0 0.0
      %2123 = vmatprep.subr.mxu0 0.0
      %2124 = vmatpush1.msra.mxu0 0.0
      %2125 = vmatprep.subr.mxu0 0.0
      %2126 = vmatpush1.msra.mxu0 0.0
      %2127 = vmatprep.subr.mxu0 0.0
      %2128 = vmatpush1.msra.mxu0 0.0
      %2129 = vmatprep.subr.mxu0 0.0
      %2130 = vmatpush1.msra.mxu0 0.0
      %2131 = vmatprep.subr.mxu0 0.0
      %2132 = vmatpush1.msra.mxu0 0.0
      %2133 = vmatprep.subr.mxu0 0.0
      %2134 = vmatpush1.msra.mxu0 0.0
      %2135 = vmatprep.subr.mxu0 0.0
      %2136 = vmatpush1.msra.mxu0 0.0
      %2137 = vmatprep.subr.mxu0 0.0
      %2138 = vmatpush1.msra.mxu0 0.0
      %2139 = vmatprep.subr.mxu0 0.0
      %2140 = vmatpush1.msra.mxu0 0.0
      %2141 = vmatprep.subr.mxu0 0.0
      %2142 = vmatpush1.msra.mxu0 0.0
      %2143 = vmatprep.subr.mxu0 0.0
      %2144 = vmatpush1.msra.mxu0 0.0
      %2145 = vmatprep.subr.mxu0 0.0
      %2146 = vmatpush1.msra.mxu0 0.0
      %2147 = vmatprep.subr.mxu0 0.0
      %2148 = vmatpush1.msra.mxu0 0.0
      %2149 = vmatprep.subr.mxu0 0.0
      %2150 = vmatpush1.msra.mxu0 0.0
      %2151 = vmatprep.subr.mxu0 0.0
      %2152 = vmatpush1.msra.mxu0 0.0
      %2153 = vmatprep.subr.mxu0 0.0
      %2154 = vmatpush1.msra.mxu0 0.0
      %2155 = vmatprep.subr.mxu0 0.0
      %2156 = vmatpush1.msra.mxu0 0.0
      %2157 = vmatprep.subr.mxu0 0.0
      %2158 = vmatpush1.msra.mxu0 0.0
      %2159 = vmatprep.subr.mxu0 0.0
      %2160 = vmatpush1.msra.mxu0 0.0
      %2161 = vmatprep.subr.mxu0 0.0
      %2162 = vmatpush1.msra.mxu0 0.0
      %2163 = vmatprep.mubr.f32.mxu0 0.0
      %v2164 = vand.u32 %v309, 4294901760
      %2165 = vmatmul.mubr.f32.gmra.mrb[0].mxu0 %v2164
      %v2166 = vpop.f32.mrb[0].mxu0
      %v2167 = vadd.f32 %v1876, %v2166
      %v2168 = vpop.f32.mrb[0].mxu0
      %v2169 = vadd.f32 %v1878, %v2168
      %2170 = vmatprep.mubr.f32.mxu0 0.0
      %v2171 = vand.u32 %v312, 4294901760
      %2172 = vmatmul.mubr.f32.gmra.mrb[0].mxu0 %v2171
      %v2173 = vpop.f32.mrb[0].mxu0
      %v2174 = vadd.f32 %v1883, %v2173
      %v2175 = vpop.f32.mrb[0].mxu0
      %v2176 = vadd.f32 %v1885, %v2175
      %2177 = vmatprep.mubr.f32.mxu0 0.0
      %v2178 = vand.u32 %v315, 4294901760
      %2179 = vmatmul.mubr.f32.gmra.mrb[0].mxu0 %v2178
      %v2180 = vpop.f32.mrb[0].mxu0
      %v2181 = vadd.f32 %v1890, %v2180
      %v2182 = vpop.f32.mrb[0].mxu0
      %v2183 = vadd.f32 %v1892, %v2182
      %2184 = vmatprep.mubr.f32.mxu0 0.0
      %v2185 = vand.u32 %v318, 4294901760
      %2186 = vmatmul.mubr.f32.gmra.mrb[0].mxu0 %v2185
      %v2187 = vpop.f32.mrb[0].mxu0
      %v2188 = vadd.f32 %v1897, %v2187
      %v2189 = vpop.f32.mrb[0].mxu0
      %v2190 = vadd.f32 %v1899, %v2189
      %2191 = vmatprep.mubr.f32.mxu0 0.0
      %v2192 = vand.u32 %v321, 4294901760
      %2193 = vmatmul.mubr.f32.gmra.mrb[0].mxu0 %v2192
      %v2194 = vpop.f32.mrb[0].mxu0
      %v2195 = vadd.f32 %v1904, %v2194
      %v2196 = vpop.f32.mrb[0].mxu0
      %v2197 = vadd.f32 %v1906, %v2196
      %2198 = vmatprep.mubr.f32.mxu0 0.0
      %v2199 = vand.u32 %v324, 4294901760
      %2200 = vmatmul.mubr.f32.gmra.mrb[0].mxu0 %v2199
      %v2201 = vpop.f32.mrb[0].mxu0
      %v2202 = vadd.f32 %v1911, %v2201
      %v2203 = vpop.f32.mrb[0].mxu0
      %v2204 = vadd.f32 %v1913, %v2203
      %2205 = vmatprep.mubr.f32.mxu0 0.0
      %v2206 = vand.u32 %v327, 4294901760
      %2207 = vmatmul.mubr.f32.gmra.mrb[0].mxu0 %v2206
      %v2208 = vpop.f32.mrb[0].mxu0
      %v2209 = vadd.f32 %v1918, %v2208
      %v2210 = vpop.f32.mrb[0].mxu0
      %v2211 = vadd.f32 %v1920, %v2210
      %2212 = vmatprep.mubr.f32.mxu0 0.0
      %v2213 = vand.u32 %v330, 4294901760
      %2214 = vmatmul.mubr.f32.gmra.mrb[0].mxu0 %v2213
      %v2215 = vpop.f32.mrb[0].mxu0
      %v2216 = vadd.f32 %v1925, %v2215
      %v2217 = vpop.f32.mrb[0].mxu0
      %v2218 = vadd.f32 %v1927, %v2217
      %2219 = vmatprep.mubr.f32.mxu0 0.0
      %v2220 = vand.u32 %v333, 4294901760
      %2221 = vmatmul.mubr.f32.gmra.mrb[0].mxu0 %v2220
      %v2222 = vpop.f32.mrb[0].mxu0
      %v2223 = vadd.f32 %v1932, %v2222
      %v2224 = vpop.f32.mrb[0].mxu0
      %v2225 = vadd.f32 %v1934, %v2224
      %2226 = vmatprep.mubr.f32.mxu0 0.0
      %v2227 = vand.u32 %v336, 4294901760
      %2228 = vmatmul.mubr.f32.gmra.mrb[0].mxu0 %v2227
      %v2229 = vpop.f32.mrb[0].mxu0
      %v2230 = vadd.f32 %v1939, %v2229
      %v2231 = vpop.f32.mrb[0].mxu0
      %v2232 = vadd.f32 %v1941, %v2231
      %2233 = vmatprep.mubr.f32.mxu0 0.0
      %v2234 = vand.u32 %v339, 4294901760
      %2235 = vmatmul.mubr.f32.gmra.mrb[0].mxu0 %v2234
      %v2236 = vpop.f32.mrb[0].mxu0
      %v2237 = vadd.f32 %v1946, %v2236
      %v2238 = vpop.f32.mrb[0].mxu0
      %v2239 = vadd.f32 %v1948, %v2238
      %2240 = vmatprep.mubr.f32.mxu0 0.0
      %v2241 = vand.u32 %v342, 4294901760
      %2242 = vmatmul.mubr.f32.gmra.mrb[0].mxu0 %v2241
      %v2243 = vpop.f32.mrb[0].mxu0
      %v2244 = vadd.f32 %v1953, %v2243
      %v2245 = vpop.f32.mrb[0].mxu0
      %v2246 = vadd.f32 %v1955, %v2245
      %2247 = vmatprep.mubr.f32.mxu0 0.0
      %v2248 = vand.u32 %v345, 4294901760
      %2249 = vmatmul.mubr.f32.gmra.mrb[0].mxu0 %v2248
      %v2250 = vpop.f32.mrb[0].mxu0
      %v2251 = vadd.f32 %v1960, %v2250
      %v2252 = vpop.f32.mrb[0].mxu0
      %v2253 = vadd.f32 %v1962, %v2252
      %2254 = vmatprep.mubr.f32.mxu0 0.0
      %v2255 = vand.u32 %v348, 4294901760
      %2256 = vmatmul.mubr.f32.gmra.mrb[0].mxu0 %v2255
      %v2257 = vpop.f32.mrb[0].mxu0
      %v2258 = vadd.f32 %v1967, %v2257
      %v2259 = vpop.f32.mrb[0].mxu0
      %v2260 = vadd.f32 %v1969, %v2259
      %2261 = vmatprep.mubr.f32.mxu0 0.0
      %v2262 = vand.u32 %v351, 4294901760
      %2263 = vmatmul.mubr.f32.gmra.mrb[0].mxu0 %v2262
      %v2264 = vpop.f32.mrb[0].mxu0
      %v2265 = vadd.f32 %v1974, %v2264
      %v2266 = vpop.f32.mrb[0].mxu0
      %v2267 = vadd.f32 %v1976, %v2266
      %2268 = vmatprep.mubr.f32.mxu0 0.0
      %v2269 = vand.u32 %v354, 4294901760
      %2270 = vmatmul.mubr.f32.gmra.mrb[0].mxu0 %v2269
      %v2271 = vpop.f32.mrb[0].mxu0
      %v2272 = vadd.f32 %v1981, %v2271
      %v2273 = vpop.f32.mrb[0].mxu0
      %v2274 = vadd.f32 %v1983, %v2273
      %2275 = vmatprep.mubr.f32.mxu0 0.0
      %v2276 = vand.u32 %v357, 4294901760
      %2277 = vmatmul.mubr.f32.gmra.mrb[0].mxu0 %v2276
      %v2278 = vpop.f32.mrb[0].mxu0
      %v2279 = vadd.f32 %v1988, %v2278
      %v2280 = vpop.f32.mrb[0].mxu0
      %v2281 = vadd.f32 %v1990, %v2280
      %2282 = vmatprep.mubr.f32.mxu0 0.0
      %v2283 = vand.u32 %v360, 4294901760
      %2284 = vmatmul.mubr.f32.gmra.mrb[0].mxu0 %v2283
      %v2285 = vpop.f32.mrb[0].mxu0
      %v2286 = vadd.f32 %v1995, %v2285
      %v2287 = vpop.f32.mrb[0].mxu0
      %v2288 = vadd.f32 %v1997, %v2287
      %2289 = vmatprep.mubr.f32.mxu0 0.0
      %v2290 = vand.u32 %v363, 4294901760
      %2291 = vmatmul.mubr.f32.gmra.mrb[0].mxu0 %v2290
      %v2292 = vpop.f32.mrb[0].mxu0
      %v2293 = vadd.f32 %v2002, %v2292
      %v2294 = vpop.f32.mrb[0].mxu0
      %v2295 = vadd.f32 %v2004, %v2294
      %2296 = vmatprep.mubr.f32.mxu0 0.0
      %v2297 = vand.u32 %v366, 4294901760
      %2298 = vmatmul.mubr.f32.gmra.mrb[0].mxu0 %v2297
      %v2299 = vpop.f32.mrb[0].mxu0
      %v2300 = vadd.f32 %v2009, %v2299
      %v2301 = vpop.f32.mrb[0].mxu0
      %v2302 = vadd.f32 %v2011, %v2301
      %2303 = vmatprep.mubr.f32.mxu0 0.0
      %v2304 = vand.u32 %v369, 4294901760
      %2305 = vmatmul.mubr.f32.gmra.mrb[0].mxu0 %v2304
      %v2306 = vpop.f32.mrb[0].mxu0
      %v2307 = vadd.f32 %v2016, %v2306
      %v2308 = vpop.f32.mrb[0].mxu0
      %v2309 = vadd.f32 %v2018, %v2308
      %2310 = vmatprep.mubr.f32.mxu0 0.0
      %v2311 = vand.u32 %v372, 4294901760
      %2312 = vmatmul.mubr.f32.gmra.mrb[0].mxu0 %v2311
      %v2313 = vpop.f32.mrb[0].mxu0
      %v2314 = vadd.f32 %v2023, %v2313
      %v2315 = vpop.f32.mrb[0].mxu0
      %v2316 = vadd.f32 %v2025, %v2315
      %2317 = vmatprep.mubr.f32.mxu0 0.0
      %v2318 = vand.u32 %v375, 4294901760
      %2319 = vmatmul.mubr.f32.gmra.mrb[0].mxu0 %v2318
      %v2320 = vpop.f32.mrb[0].mxu0
      %v2321 = vadd.f32 %v2030, %v2320
      %v2322 = vpop.f32.mrb[0].mxu0
      %v2323 = vadd.f32 %v2032, %v2322
      %2324 = vmatprep.mubr.f32.mxu0 0.0
      %v2325 = vand.u32 %v378, 4294901760
      %2326 = vmatmul.mubr.f32.gmra.mrb[0].mxu0 %v2325
      %v2327 = vpop.f32.mrb[0].mxu0
      %v2328 = vadd.f32 %v2037, %v2327
      %v2329 = vpop.f32.mrb[0].mxu0
      %v2330 = vadd.f32 %v2039, %v2329
      %2331 = vmatprep.mubr.f32.mxu0 0.0
      %v2332 = vand.u32 %v381, 4294901760
      %2333 = vmatmul.mubr.f32.gmra.mrb[0].mxu0 %v2332
      %v2334 = vpop.f32.mrb[0].mxu0
      %v2335 = vadd.f32 %v2044, %v2334
      %v2336 = vpop.f32.mrb[0].mxu0
      %v2337 = vadd.f32 %v2046, %v2336
      %2338 = vmatprep.mubr.f32.mxu0 0.0
      %v2339 = vand.u32 %v384, 4294901760
      %2340 = vmatmul.mubr.f32.gmra.mrb[0].mxu0 %v2339
      %v2341 = vpop.f32.mrb[0].mxu0
      %v2342 = vadd.f32 %v2051, %v2341
      %v2343 = vpop.f32.mrb[0].mxu0
      %v2344 = vadd.f32 %v2053, %v2343
      %2345 = vmatprep.mubr.f32.mxu0 0.0
      %v2346 = vand.u32 %v387, 4294901760
      %2347 = vmatmul.mubr.f32.gmra.mrb[0].mxu0 %v2346
      %v2348 = vpop.f32.mrb[0].mxu0
      %v2349 = vadd.f32 %v2058, %v2348
      %v2350 = vpop.f32.mrb[0].mxu0
      %v2351 = vadd.f32 %v2060, %v2350
      %2352 = vmatprep.mubr.f32.mxu0 0.0
      %v2353 = vand.u32 %v390, 4294901760
      %2354 = vmatmul.mubr.f32.gmra.mrb[0].mxu0 %v2353
      %v2355 = vpop.f32.mrb[0].mxu0
      %v2356 = vadd.f32 %v2065, %v2355
      %v2357 = vpop.f32.mrb[0].mxu0
      %v2358 = vadd.f32 %v2067, %v2357
      %2359 = vmatprep.mubr.f32.mxu0 0.0
      %v2360 = vand.u32 %v393, 4294901760
      %2361 = vmatmul.mubr.f32.gmra.mrb[0].mxu0 %v2360
      %v2362 = vpop.f32.mrb[0].mxu0
      %v2363 = vadd.f32 %v2072, %v2362
      %v2364 = vpop.f32.mrb[0].mxu0
      %v2365 = vadd.f32 %v2074, %v2364
      %2366 = vmatprep.mubr.f32.mxu0 0.0
      %v2367 = vand.u32 %v396, 4294901760
      %2368 = vmatmul.mubr.f32.gmra.mrb[0].mxu0 %v2367
      %v2369 = vpop.f32.mrb[0].mxu0
      %v2370 = vadd.f32 %v2079, %v2369
      %v2371 = vpop.f32.mrb[0].mxu0
      %v2372 = vadd.f32 %v2081, %v2371
      %2373 = vmatprep.mubr.f32.mxu0 0.0
      %v2374 = vand.u32 %v399, 4294901760
      %2375 = vmatmul.mubr.f32.gmra.mrb[0].mxu0 %v2374
      %v2376 = vpop.f32.mrb[0].mxu0
      %v2377 = vadd.f32 %v2086, %v2376
      %v2378 = vpop.f32.mrb[0].mxu0
      %v2379 = vadd.f32 %v2088, %v2378
      %2380 = vmatprep.mubr.f32.mxu0 0.0
      %v2381 = vand.u32 %v402, 4294901760
      %2382 = vmatmul.mubr.f32.gmra.mrb[0].mxu0 %v2381
      %v2383 = vpop.f32.mrb[0].mxu0
      %v2384 = vadd.f32 %v2093, %v2383
      %v2385 = vpop.f32.mrb[0].mxu0
      %v2386 = vadd.f32 %v2095, %v2385
      %2387 = vdwg.mxu0
      %2388 = vst [vmem:[%s236] sm:$0xff] %v2167
      %2389 = vst [vmem:[%s236 + $0x8] sm:$0xff] %v2169
      %2390 = vst [vmem:[%s236 + $0x10] sm:$0xff] %v2174
      %2391 = vst [vmem:[%s236 + $0x18] sm:$0xff] %v2176
      %2392 = vst [vmem:[%s236 + $0x20] sm:$0xff] %v2181
      %2393 = vst [vmem:[%s236 + $0x28] sm:$0xff] %v2183
      %2394 = vst [vmem:[%s236 + $0x30] sm:$0xff] %v2188
      %2395 = vst [vmem:[%s236 + $0x38] sm:$0xff] %v2190
      %2396 = vst [vmem:[%s236 + $0x40] sm:$0xff] %v2195
      %2397 = vst [vmem:[%s236 + $0x48] sm:$0xff] %v2197
      %2398 = vst [vmem:[%s236 + $0x50] sm:$0xff] %v2202
      %2399 = vst [vmem:[%s236 + $0x58] sm:$0xff] %v2204
      %2400 = vst [vmem:[%s236 + $0x60] sm:$0xff] %v2209
      %2401 = vst [vmem:[%s236 + $0x68] sm:$0xff] %v2211
      %2402 = vst [vmem:[%s236 + $0x70] sm:$0xff] %v2216
      %2403 = vst [vmem:[%s236 + $0x78] sm:$0xff] %v2218
      %2404 = vst [vmem:[%s236 + $0x80] sm:$0xff] %v2223
      %2405 = vst [vmem:[%s236 + $0x88] sm:$0xff] %v2225
      %2406 = vst [vmem:[%s236 + $0x90] sm:$0xff] %v2230
      %2407 = vst [vmem:[%s236 + $0x98] sm:$0xff] %v2232
      %2408 = vst [vmem:[%s236 + $0xa0] sm:$0xff] %v2237
      %2409 = vst [vmem:[%s236 + $0xa8] sm:$0xff] %v2239
      %2410 = vst [vmem:[%s236 + $0xb0] sm:$0xff] %v2244
      %2411 = vst [vmem:[%s236 + $0xb8] sm:$0xff] %v2246
      %2412 = vst [vmem:[%s236 + $0xc0] sm:$0xff] %v2251
      %2413 = vst [vmem:[%s236 + $0xc8] sm:$0xff] %v2253
      %2414 = vst [vmem:[%s236 + $0xd0] sm:$0xff] %v2258
      %2415 = vst [vmem:[%s236 + $0xd8] sm:$0xff] %v2260
      %2416 = vst [vmem:[%s236 + $0xe0] sm:$0xff] %v2265
      %2417 = vst [vmem:[%s236 + $0xe8] sm:$0xff] %v2267
      %2418 = vst [vmem:[%s236 + $0xf0] sm:$0xff] %v2272
      %2419 = vst [vmem:[%s236 + $0xf8] sm:$0xff] %v2274
      %2420 = vst [vmem:[%s236 + $0x100] sm:$0xff] %v2279
      %2421 = vst [vmem:[%s236 + $0x108] sm:$0xff] %v2281
      %2422 = vst [vmem:[%s236 + $0x110] sm:$0xff] %v2286
      %2423 = vst [vmem:[%s236 + $0x118] sm:$0xff] %v2288
      %2424 = vst [vmem:[%s236 + $0x120] sm:$0xff] %v2293
      %2425 = vst [vmem:[%s236 + $0x128] sm:$0xff] %v2295
      %2426 = vst [vmem:[%s236 + $0x130] sm:$0xff] %v2300
      %2427 = vst [vmem:[%s236 + $0x138] sm:$0xff] %v2302
      %2428 = vst [vmem:[%s236 + $0x140] sm:$0xff] %v2307
      %2429 = vst [vmem:[%s236 + $0x148] sm:$0xff] %v2309
      %2430 = vst [vmem:[%s236 + $0x150] sm:$0xff] %v2314
      %2431 = vst [vmem:[%s236 + $0x158] sm:$0xff] %v2316
      %2432 = vst [vmem:[%s236 + $0x160] sm:$0xff] %v2321
      %2433 = vst [vmem:[%s236 + $0x168] sm:$0xff] %v2323
      %2434 = vst [vmem:[%s236 + $0x170] sm:$0xff] %v2328
      %2435 = vst [vmem:[%s236 + $0x178] sm:$0xff] %v2330
      %2436 = vst [vmem:[%s236 + $0x180] sm:$0xff] %v2335
      %2437 = vst [vmem:[%s236 + $0x188] sm:$0xff] %v2337
      %2438 = vst [vmem:[%s236 + $0x190] sm:$0xff] %v2342
      %2439 = vst [vmem:[%s236 + $0x198] sm:$0xff] %v2344
      %2440 = vst [vmem:[%s236 + $0x1a0] sm:$0xff] %v2349
      %2441 = vst [vmem:[%s236 + $0x1a8] sm:$0xff] %v2351
      %2442 = vst [vmem:[%s236 + $0x1b0] sm:$0xff] %v2356
      %2443 = vst [vmem:[%s236 + $0x1b8] sm:$0xff] %v2358
      %2444 = vst [vmem:[%s236 + $0x1c0] sm:$0xff] %v2363
      %2445 = vst [vmem:[%s236 + $0x1c8] sm:$0xff] %v2365
      %2446 = vst [vmem:[%s236 + $0x1d0] sm:$0xff] %v2370
      %2447 = vst [vmem:[%s236 + $0x1d8] sm:$0xff] %v2372
      %2448 = vst [vmem:[%s236 + $0x1e0] sm:$0xff] %v2377
      %2449 = vst [vmem:[%s236 + $0x1e8] sm:$0xff] %v2379
      %2450 = vst [vmem:[%s236 + $0x1f0] sm:$0xff] %v2384
      %2451 = vst [vmem:[%s236 + $0x1f8] sm:$0xff] %v2386
      %s2452 = smul.u32 32, %s19
      %s2453 = smul.u32 2, %s20
      %p2454 = scmp.lt.s32.totalorder %s18, 1
      %s2455 = scalar_select %p2454, %s18, 1
      %p2456 = scmp.lt.s32.totalorder %s2452, 31
      %s2457 = scalar_select %p2456, %s2452, 31
      %p2458 = scmp.lt.s32.totalorder %s2453, 1
      %s2459 = scalar_select %p2458, %s2453, 1
      %s2460 = smul.addr %s2457, 2
      %s2461 = sadd.s32 %s2459, %s2460
      %s2462 = smul.addr %s2455, 64
      %s2463 = sadd.s32 %s2461, %s2462
      %s2464 = smul.addr %s2463, 8
      %s2465 = scalar_lea.vmem %s2, %s2464
      // Predicated region
      $region29: #{feature_correlation.1} parent=27 // pred_check
        %p2466 = pneg %p110
      $region30: #{feature_correlation.1} parent=27 // pred_check_branch
        %2468 = sbr.rel (%p2466) target = $region32
      $region31: #{feature_correlation.1} parent=27 // pred_region
        %s2469 = smul.u32 32, %s19
        %s2470 = smul.u32 2, %s20
      $region32: #{feature_correlation.1} parent=27 // pred_fallthru
        _
    $region28: #{feature_correlation.1} parent=5 // pred_fallthru
      _
    %p2471 = scmp.le.s32.totalorder 2, %s8
    // Predicated region
    $region33: #{feature_correlation.1} parent=5 // pred_check
      %p2472 = pneg %p2471
    $region34: #{feature_correlation.1} parent=5 // pred_check_branch
      %2474 = sbr.rel (%p2472) target = $region36
    $region35: #{feature_correlation.1} parent=5 // pred_region
      %s2475 = ssub.s32 %s8, 2
      // Predicated region
      $region37: #{feature_correlation.1} parent=35 // pred_check
        %p2476 = pneg %p116
      $region38: #{feature_correlation.1} parent=35 // pred_check_branch
        %2478 = sbr.rel (%p2476) target = $region40
      $region39: #{feature_correlation.1} parent=35 // pred_region
        %s2479 = smul.u32 32, %s22
        %s2480 = smul.u32 2, %s23
        %p2481 = scmp.lt.s32.totalorder %s21, 1
        %s2482 = scalar_select %p2481, %s21, 1
        %p2483 = scmp.lt.s32.totalorder %s2479, 31
        %s2484 = scalar_select %p2483, %s2479, 31
        %p2485 = scmp.lt.s32.totalorder %s2480, 1
        %s2486 = scalar_select %p2485, %s2480, 1
        %s2487 = smul.addr %s2484, 2
        %s2488 = sadd.s32 %s2486, %s2487
        %s2489 = smul.addr %s2482, 64
        %s2490 = sadd.s32 %s2488, %s2489
        %s2491 = smul.addr %s2490, 8
        %s2492 = scalar_lea.vmem %s2, %s2491
      $region40: #{feature_correlation.1} parent=35 // pred_fallthru
        _
    $region36: #{feature_correlation.1} parent=5 // pred_fallthru
      _
  $region6: #{feature_correlation.1} parent=0 // loop_footer
    %s12 = sadd.s32 1, %s8
  $region7: #{feature_correlation.1} parent=0 // loop_footer_branch
    %7 = sbr.rel target = $region3
  $region8: #{feature_correlation.1} parent=0 // loop_exit
    _

</llo_original>
